<compile_context>
chip_gen: v6e
topology: v6e:2x2x1
jax: 0.10.0
libtpu: 0.0.40
codegen_flags: <defaults>
</compile_context>

<pallas_src>
import functools

import numpy as np
import jax
import jax.numpy as jnp
from jax import lax
from jax.experimental import pallas as pl
from jax.experimental.pallas import tpu as pltpu


def _round_up(x, m):
    return (x + m - 1) // m * m


def _vmem_capacity_bytes():
    try:
        return int(pltpu.get_tpu_info().vmem_capacity_bytes)
    except Exception:                     # pragma: no cover - conservative fallback
        return 64 * 1024 * 1024           # v7x per-TensorCore VMEM


# ----------------------------------------------------------------------------------
# Fused path: conv + BN(train) + ELU in ONE pallas_call (no HBM intermediate).
# ----------------------------------------------------------------------------------
def _conv_bn_elu_fused_kernel(xr_ref, w_ref, m_ref, g_ref, b_ref, o_ref,
                              yall_ref, s1_ref, s2_ref, *, k, la, count, eps):
    n = pl.program_id(0)

    @pl.when(n == 0)
    def _():
        s1_ref[...] = jnp.zeros_like(s1_ref)
        s2_ref[...] = jnp.zeros_like(s2_ref)

    # Conv for image n: k MXU dots of contraction depth k*Cin (row-taps pre-stacked on
    # the host); the k column-taps are small static lane shifts of the loaded tile.
    x = xr_ref[0]                                    # (k*Cin, Lr) bf16
    acc = None
    for dj in range(k):
        part = jnp.dot(w_ref[dj], x[:, dj:dj + la],
                       preferred_element_type=jnp.float32)
        acc = part if acc is None else acc + part    # (Cout, La) f32
    yall_ref[n] = acc                                # stays resident in VMEM

    # BN statistics over the valid (strided) anchors: lane-dense mask, VPU + XLU only.
    m = m_ref[...]                                   # (1, La)
    s1_ref[...] += jnp.sum(acc * m, axis=-1, keepdims=True)
    s2_ref[...] += jnp.sum(acc * acc * m, axis=-1, keepdims=True)

    # Finalize once the whole batch has been seen: global batch stats -> BN -> ELU.
    @pl.when(n == pl.num_programs(0) - 1)
    def _():
        inv_n = 1.0 / count
        mean = s1_ref[...] * inv_n                               # (Cout, 1)
        var = jnp.maximum(s2_ref[...] * inv_n - mean * mean, 0.0)
        scale = g_ref[...] * lax.rsqrt(var + eps)
        shift = b_ref[...] - mean * scale
        y = yall_ref[...] * scale[None] + shift[None]            # (N, Cout, La)
        # ELU(alpha=1); exp(min(y,0))-1 kept instead of expm1 for guaranteed lowering.
        o_ref[...] = jnp.where(y > 0.0, y,
                               jnp.exp(jnp.minimum(y, 0.0)) - 1.0).astype(o_ref.dtype)


# ----------------------------------------------------------------------------------
# Fallback path (working set too big for VMEM): two pallas_calls, bf16 intermediate.
# ----------------------------------------------------------------------------------
def _conv_stats_kernel(xr_ref, w_ref, m_ref, y_ref, s1_ref, s2_ref, *, k, la):
    @pl.when(pl.program_id(0) == 0)
    def _():
        s1_ref[...] = jnp.zeros_like(s1_ref)
        s2_ref[...] = jnp.zeros_like(s2_ref)

    x = xr_ref[0]
    acc = None
    for dj in range(k):
        part = jnp.dot(w_ref[dj], x[:, dj:dj + la],
                       preferred_element_type=jnp.float32)
        acc = part if acc is None else acc + part
    y_ref[0] = acc.astype(y_ref.dtype)        # bf16 store: halves the intermediate HBM traffic

    m = m_ref[...]
    s1_ref[...] += jnp.sum(acc * m, axis=-1, keepdims=True)       # stats stay f32
    s2_ref[...] += jnp.sum(acc * acc * m, axis=-1, keepdims=True)


def _bn_elu_kernel(y_ref, s1_ref, s2_ref, g_ref, b_ref, o_ref, *, count, eps):
    inv_n = 1.0 / count
    mean = s1_ref[...] * inv_n
    var = jnp.maximum(s2_ref[...] * inv_n - mean * mean, 0.0)
    scale = g_ref[...] * lax.rsqrt(var + eps)
    shift = b_ref[...] - mean * scale
    y = y_ref[0].astype(jnp.float32) * scale + shift
    o_ref[0] = jnp.where(y > 0.0, y,
                         jnp.exp(jnp.minimum(y, 0.0)) - 1.0).astype(o_ref.dtype)


# ----------------------------------------------------------------------------------
# Wrapper
# ----------------------------------------------------------------------------------
def conv_bn_elu(x, w, gamma, beta, *, stride, out_dtype=jnp.float32, eps=1e-5,
                force_two_pass=False):
    """pad -> Conv2d (bias dropped; cancelled by train-mode BN) -> BatchNorm2d -> ELU.

    x: (N, Cin, H, W); w: (Cout, Cin, k, k); gamma, beta: (Cout,).
    Returns (N, Cout, Ho, Wo) in out_dtype (NCHW, like the PyTorch module).
    """
    N, Cin, H, W = x.shape
    Cout, _, k, _ = w.shape
    p = (k - 1) // 2
    Hp, Wp = H + 2 * p, W + 2 * p
    Ho = (Hp - k) // stride + 1
    Wo = (Wp - k) // stride + 1

    La = _round_up(Hp * Wp, 128)                  # lane-dense dense-anchor length
    Lr = La + _round_up(k - 1, 128)               # + room for the k-1 column lane shifts
    Lx = Lr + (k - 1) * Wp                        # flat length needed by the row-tap slabs
    KC = k * Cin                                  # contraction depth of each in-kernel dot

    # ---- XLA glue (rectangular copies only): pad spatially, flatten (H,W) onto the
    # lane axis, zero-extend, and stack the k row-taps along channels (k-fold, NOT a
    # k^2 im2col) so each kernel dot contracts over k*Cin.  Streams are bf16.
    xp = jnp.pad(x, ((0, 0), (0, 0), (p, p), (p, p)))
    xflat = jnp.pad(xp.reshape(N, Cin, Hp * Wp), ((0, 0), (0, 0), (0, Lx - Hp * Wp)))
    xr = jnp.concatenate([xflat[:, :, di * Wp: di * Wp + Lr] for di in range(k)],
                         axis=1).astype(jnp.bfloat16)            # (N, k*Cin, Lr)

    # Per-column-tap weights: wr[dj, co, di*Cin + ci] = w[co, ci, di, dj].
    wr = jnp.transpose(w, (3, 0, 2, 1)).reshape(k, Cout, KC).astype(jnp.bfloat16)

    # Lane-dense validity mask over the dense anchor grid (1 at real strided outputs).
    rv = np.zeros(Hp, np.float32); rv[np.arange(Ho) * stride] = 1.0
    cv = np.zeros(Wp, np.float32); cv[np.arange(Wo) * stride] = 1.0
    mflat = np.zeros(La, np.float32); mflat[:Hp * Wp] = np.outer(rv, cv).reshape(-1)
    mask = jnp.asarray(mflat.reshape(1, La))

    g2 = gamma.reshape(Cout, 1).astype(jnp.float32)
    b2 = beta.reshape(Cout, 1).astype(jnp.float32)
    count = float(N * Ho * Wo)                    # true BN sample count
    out_isize = jnp.dtype(out_dtype).itemsize

    # ---- VMEM budgeting: the fused path keeps the whole batch's conv output resident;
    # fall back to the two-pass path if that will not comfortably fit this generation.
    cap = _vmem_capacity_bytes()
    fused_ws = (N * Cout * La * (4 + 2 * out_isize)           # f32 scratch + out buffers
                + 2 * KC * Lr * 2 + k * Cout * KC * 2         # dbl-buffered input + weights
                + La * 4 + 4 * Cout * 4 + (1 << 16))
    twopass_ws = (2 * KC * Lr * 2 + k * Cout * KC * 2
                  + 2 * Cout * La * (2 + 4 + out_isize) + La * 4 + (1 << 16))
    use_fused = (not force_two_pass) and fused_ws <= min(cap // 3, 48 * 1024 * 1024)
    ws = fused_ws if use_fused else twopass_ws
    vmem_limit = int(min(cap * 3 // 4, max(32 * 1024 * 1024, 2 * ws)))

    if use_fused:
        out_dense = pl.pallas_call(
            functools.partial(_conv_bn_elu_fused_kernel,
                              k=k, la=La, count=count, eps=eps),
            out_shape=jax.ShapeDtypeStruct((N, Cout, La), out_dtype),
            grid=(N,),
            in_specs=[pl.BlockSpec((1, KC, Lr), lambda n: (n, 0, 0)),
                      pl.BlockSpec((k, Cout, KC), lambda n: (0, 0, 0)),
                      pl.BlockSpec((1, La), lambda n: (0, 0)),
                      pl.BlockSpec((Cout, 1), lambda n: (0, 0)),
                      pl.BlockSpec((Cout, 1), lambda n: (0, 0))],
            out_specs=pl.BlockSpec((N, Cout, La), lambda n: (0, 0, 0)),
            scratch_shapes=[pltpu.VMEM((N, Cout, La), jnp.float32),   # resident conv out
                            pltpu.VMEM((Cout, 1), jnp.float32),       # sum
                            pltpu.VMEM((Cout, 1), jnp.float32)],      # sum of squares
            compiler_params=pltpu.CompilerParams(
                # Stats accumulate across this axis -> must stay "arbitrary".
                dimension_semantics=("arbitrary",),
                vmem_limit_bytes=vmem_limit),
            cost_estimate=pl.CostEstimate(
                flops=2 * N * Cout * La * (k * KC + 6) + 8 * N * Cout * La,
                transcendentals=N * Cout * La,
                bytes_accessed=N * KC * Lr * 2 + k * Cout * KC * 2 + La * 4
                               + N * Cout * La * out_isize),
        )(xr, wr, mask, g2, b2)
    else:
        conv_y, s1, s2 = pl.pallas_call(
            functools.partial(_conv_stats_kernel, k=k, la=La),
            out_shape=(jax.ShapeDtypeStruct((N, Cout, La), jnp.bfloat16),
                       jax.ShapeDtypeStruct((Cout, 1), jnp.float32),
                       jax.ShapeDtypeStruct((Cout, 1), jnp.float32)),
            grid=(N,),
            in_specs=[pl.BlockSpec((1, KC, Lr), lambda n: (n, 0, 0)),
                      pl.BlockSpec((k, Cout, KC), lambda n: (0, 0, 0)),
                      pl.BlockSpec((1, La), lambda n: (0, 0))],
            out_specs=(pl.BlockSpec((1, Cout, La), lambda n: (n, 0, 0)),
                       pl.BlockSpec((Cout, 1), lambda n: (0, 0)),
                       pl.BlockSpec((Cout, 1), lambda n: (0, 0))),
            compiler_params=pltpu.CompilerParams(
                dimension_semantics=("arbitrary",),
                vmem_limit_bytes=vmem_limit),
            cost_estimate=pl.CostEstimate(
                flops=2 * N * Cout * La * (k * KC + 6),
                transcendentals=0,
                bytes_accessed=N * KC * Lr * 2 + k * Cout * KC * 2 + La * 4
                               + N * Cout * La * 2 + 2 * Cout * 4),
        )(xr, wr, mask)

        out_dense = pl.pallas_call(
            functools.partial(_bn_elu_kernel, count=count, eps=eps),
            out_shape=jax.ShapeDtypeStruct((N, Cout, La), out_dtype),
            grid=(N,),
            in_specs=[pl.BlockSpec((1, Cout, La), lambda n: (n, 0, 0)),
                      pl.BlockSpec((Cout, 1), lambda n: (0, 0)),
                      pl.BlockSpec((Cout, 1), lambda n: (0, 0)),
                      pl.BlockSpec((Cout, 1), lambda n: (0, 0)),
                      pl.BlockSpec((Cout, 1), lambda n: (0, 0))],
            out_specs=pl.BlockSpec((1, Cout, La), lambda n: (n, 0, 0)),
            compiler_params=pltpu.CompilerParams(
                dimension_semantics=("parallel",),      # shards across v7x's 2 TCs
                vmem_limit_bytes=vmem_limit),
            cost_estimate=pl.CostEstimate(
                flops=4 * N * Cout * La,
                transcendentals=N * Cout * La,
                bytes_accessed=N * Cout * La * (2 + out_isize) + 4 * Cout * 4),
        )(conv_y, s1, s2, g2, b2)

    # ---- XLA glue: gather the valid (strided) anchors back to NCHW.
    y = out_dense[:, :, :Hp * Wp].reshape(N, Cout, Hp, Wp)
    return y[:, :, 0:stride * Ho:stride, 0:stride * Wo:stride]


def init_convblock_params(key, num_in, num_out, kernel_size):
    k = kernel_size
    k1, k2, k3, k4 = jax.random.split(key, 4)
    sc1 = 1.0 / (num_in * k * k) ** 0.5
    sc2 = 1.0 / (num_out * k * k) ** 0.5
    return {
        # conv1 (stride 1)
        "w1": jax.random.normal(k1, (num_out, num_in, k, k), jnp.float32) * sc1,
        # Conv biases kept for parameter parity with nn.Conv2d but NOT used: a per-
        # channel constant before training-mode BatchNorm is exactly cancelled by the
        # mean subtraction (would need re-adding for eval-mode BN with running stats).
        "b1": jax.random.normal(k2, (num_out,), jnp.float32) * sc1,
        "g1": jnp.ones((num_out,), jnp.float32),      # BN weight (PyTorch default)
        "bt1": jnp.zeros((num_out,), jnp.float32),    # BN bias   (PyTorch default)
        # conv2 (stride 2)
        "w2": jax.random.normal(k3, (num_out, num_out, k, k), jnp.float32) * sc2,
        "b2": jax.random.normal(k4, (num_out,), jnp.float32) * sc2,
        "g2": jnp.ones((num_out,), jnp.float32),
        "bt2": jnp.zeros((num_out,), jnp.float32),
    }


def convblock_forward(x_nchw, params, force_two_pass=False):
    """convblock.forward: conv(stride 1) -> conv(stride 2), each pad+Conv2d+BN(train)+ELU."""
    h = conv_bn_elu(x_nchw, params["w1"], params["g1"], params["bt1"], stride=1,
                    out_dtype=jnp.bfloat16, force_two_pass=force_two_pass)
    return conv_bn_elu(h, params["w2"], params["g2"], params["bt2"], stride=2,
                       out_dtype=jnp.float32, force_two_pass=force_two_pass)


# ---- pure-XLA reference (mirrors the PyTorch module, f32 throughout) --------------
def _conv_bn_elu_ref(x, w, b, gamma, beta, stride, eps=1e-5):
    p = (w.shape[-1] - 1) // 2
    y = lax.conv_general_dilated(x, w, window_strides=(stride, stride),
                                 padding=((p, p), (p, p)),
                                 dimension_numbers=("NCHW", "OIHW", "NCHW"))
    y = y + b.reshape(1, -1, 1, 1)
    mean = jnp.mean(y, axis=(0, 2, 3), keepdims=True)
    var = jnp.mean((y - mean) ** 2, axis=(0, 2, 3), keepdims=True)
    y = (y - mean) * lax.rsqrt(var + eps)
    y = y * gamma.reshape(1, -1, 1, 1) + beta.reshape(1, -1, 1, 1)
    return jnp.where(y > 0, y, jnp.expm1(jnp.minimum(y, 0.0)))


def convblock_ref(x, params):
    h = _conv_bn_elu_ref(x, params["w1"], params["b1"], params["g1"], params["bt1"], 1)
    return _conv_bn_elu_ref(h, params["w2"], params["b2"], params["g2"], params["bt2"], 2)


if __name__ == "__main__":
    key = jax.random.PRNGKey(0)
    kx, kp = jax.random.split(key)

    N, Cin, H, W = 2, 4, 16, 16
    Cout, ksize = 8, 3

    x = jax.random.normal(kx, (N, Cin, H, W), jnp.float32)
    params = init_convblock_params(kp, Cin, Cout, ksize)

    out = jax.block_until_ready(jax.jit(convblock_forward)(x, params))
    assert out.shape == (N, Cout, H // 2, W // 2), out.shape
    assert bool(jnp.all(jnp.isfinite(out)))

    # Exercise the two-pass fallback path too, and cross-check both against an XLA
    # reference (tolerances account for the bf16 activation / weight streams).
    out_tp = jax.block_until_ready(
        jax.jit(functools.partial(convblock_forward, force_two_pass=True))(x, params))
    ref = jax.block_until_ready(jax.jit(convblock_ref)(x, params))
    assert float(jnp.max(jnp.abs(out - out_tp))) < 1e-1
    assert float(jnp.max(jnp.abs(out - ref))) < 2e-1

    print("KERNEL_OK")
</pallas_src>

<mosaic_0001>
module attributes {stable_mosaic.version = 11 : i64} {
  func.func @_conv_bn_elu_fused_kernel(%arg0: i32, %arg1: memref<1x12x512xbf16, #tpu.memory_space<vmem>>, %arg2: memref<3x8x12xbf16, #tpu.memory_space<vmem>>, %arg3: memref<1x384xf32, #tpu.memory_space<vmem>>, %arg4: memref<8x1xf32, #tpu.memory_space<vmem>>, %arg5: memref<8x1xf32, #tpu.memory_space<vmem>>, %arg6: memref<2x8x384xbf16, #tpu.memory_space<vmem>>, %arg7: memref<2x8x384xf32, #tpu.memory_space<vmem>>, %arg8: memref<8x1xf32, #tpu.memory_space<vmem>>, %arg9: memref<8x1xf32, #tpu.memory_space<vmem>>) attributes {dimension_semantics = [#tpu.dimension_semantics<arbitrary>], iteration_bounds = array<i64: 2>, scalar_prefetch = 0 : i64, scratch_operands = 3 : i64, tpu.core_type = #tpu.core_type<tc>, window_params = [{transform_indices = @transform_0, window_bounds = array<i64: 1, 12, 512>}, {pipeline_mode = #tpu.pipeline_mode<synchronous>, transform_indices = @transform_1, window_bounds = array<i64: 3, 8, 12>}, {pipeline_mode = #tpu.pipeline_mode<synchronous>, transform_indices = @transform_2, window_bounds = array<i64: 1, 384>}, {pipeline_mode = #tpu.pipeline_mode<synchronous>, transform_indices = @transform_3, window_bounds = array<i64: 8, 1>}, {pipeline_mode = #tpu.pipeline_mode<synchronous>, transform_indices = @transform_4, window_bounds = array<i64: 8, 1>}, {pipeline_mode = #tpu.pipeline_mode<synchronous>, transform_indices = @transform_5, window_bounds = array<i64: 2, 8, 384>}]} {
    %c0_i32 = arith.constant 0 : i32
    %0 = arith.cmpi eq, %arg0, %c0_i32 : i32
    %1 = arith.extui %0 : i1 to i32
    %c0_i32_0 = arith.constant 0 : i32
    %2 = arith.cmpi ne, %1, %c0_i32_0 : i32
    scf.if %2 {
      %cst_27 = arith.constant 0.000000e+00 : f32
      %42 = vector.broadcast %cst_27 : f32 to vector<8x1xf32>
      %c0_28 = arith.constant 0 : index
      %c0_29 = arith.constant 0 : index
      %43 = vector.load %arg8[%c0_28, %c0_29] : memref<8x1xf32, #tpu.memory_space<vmem>>, vector<8x1xf32>
      tpu.vector_store %arg8[%c0_28, %c0_29], %42 {strides = array<i32>} : memref<8x1xf32, #tpu.memory_space<vmem>>, vector<8x1xf32>,
      %cst_30 = arith.constant 0.000000e+00 : f32
      %44 = vector.broadcast %cst_30 : f32 to vector<8x1xf32>
      %c0_31 = arith.constant 0 : index
      %c0_32 = arith.constant 0 : index
      %45 = vector.load %arg9[%c0_31, %c0_32] : memref<8x1xf32, #tpu.memory_space<vmem>>, vector<8x1xf32>
      tpu.vector_store %arg9[%c0_31, %c0_32], %44 {strides = array<i32>} : memref<8x1xf32, #tpu.memory_space<vmem>>, vector<8x1xf32>,
    } else {
    }
    %c0 = arith.constant 0 : index
    %c0_1 = arith.constant 0 : index
    %c0_2 = arith.constant 0 : index
    %3 = vector.load %arg1[%c0, %c0_1, %c0_2] : memref<1x12x512xbf16, #tpu.memory_space<vmem>>, vector<1x12x512xbf16>
    %4 = vector.shape_cast %3 : vector<1x12x512xbf16> to vector<12x512xbf16>
    %c0_3 = arith.constant 0 : index
    %c0_4 = arith.constant 0 : index
    %c0_5 = arith.constant 0 : index
    %5 = vector.load %arg2[%c0_3, %c0_4, %c0_5] : memref<3x8x12xbf16, #tpu.memory_space<vmem>>, vector<1x8x12xbf16>
    %6 = vector.shape_cast %5 : vector<1x8x12xbf16> to vector<8x12xbf16>
    %7 = vector.extract_strided_slice %4 {offsets = [0, 0], sizes = [12, 384], strides = [1, 1]} : vector<12x512xbf16> to vector<12x384xbf16>
    %cst = arith.constant dense<0.000000e+00> : vector<8x384xf32>
    %8 = tpu.matmul %6, %7, %cst {dimension_numbers = #tpu.dot_dimension_numbers<[1], [0], [0], [1], [0, 0, 1, 1], [], []>} : vector<8x12xbf16>, vector<12x384xbf16>, vector<8x384xf32> -> vector<8x384xf32>
    %c1 = arith.constant 1 : index
    %c0_6 = arith.constant 0 : index
    %c0_7 = arith.constant 0 : index
    %9 = vector.load %arg2[%c1, %c0_6, %c0_7] : memref<3x8x12xbf16, #tpu.memory_space<vmem>>, vector<1x8x12xbf16>
    %10 = vector.shape_cast %9 : vector<1x8x12xbf16> to vector<8x12xbf16>
    %11 = vector.extract_strided_slice %4 {offsets = [0, 1], sizes = [12, 384], strides = [1, 1]} : vector<12x512xbf16> to vector<12x384xbf16>
    %cst_8 = arith.constant dense<0.000000e+00> : vector<8x384xf32>
    %12 = tpu.matmul %10, %11, %cst_8 {dimension_numbers = #tpu.dot_dimension_numbers<[1], [0], [0], [1], [0, 0, 1, 1], [], []>} : vector<8x12xbf16>, vector<12x384xbf16>, vector<8x384xf32> -> vector<8x384xf32>
    %13 = arith.addf %8, %12 : vector<8x384xf32>
    %c2 = arith.constant 2 : index
    %c0_9 = arith.constant 0 : index
    %c0_10 = arith.constant 0 : index
    %14 = vector.load %arg2[%c2, %c0_9, %c0_10] : memref<3x8x12xbf16, #tpu.memory_space<vmem>>, vector<1x8x12xbf16>
    %15 = vector.shape_cast %14 : vector<1x8x12xbf16> to vector<8x12xbf16>
    %16 = vector.extract_strided_slice %4 {offsets = [0, 2], sizes = [12, 384], strides = [1, 1]} : vector<12x512xbf16> to vector<12x384xbf16>
    %cst_11 = arith.constant dense<0.000000e+00> : vector<8x384xf32>
    %17 = tpu.matmul %15, %16, %cst_11 {dimension_numbers = #tpu.dot_dimension_numbers<[1], [0], [0], [1], [0, 0, 1, 1], [], []>} : vector<8x12xbf16>, vector<12x384xbf16>, vector<8x384xf32> -> vector<8x384xf32>
    %18 = arith.addf %13, %17 : vector<8x384xf32>
    %19 = arith.index_cast %arg0 : i32 to index
    %c0_12 = arith.constant 0 : index
    %c0_13 = arith.constant 0 : index
    %20 = vector.load %arg7[%19, %c0_12, %c0_13] : memref<2x8x384xf32, #tpu.memory_space<vmem>>, vector<1x8x384xf32>
    %21 = vector.shape_cast %20 : vector<1x8x384xf32> to vector<8x384xf32>
    %22 = vector.shape_cast %18 : vector<8x384xf32> to vector<1x8x384xf32>
    tpu.vector_store %arg7[%19, %c0_12, %c0_13], %22 {strides = array<i32>} : memref<2x8x384xf32, #tpu.memory_space<vmem>>, vector<1x8x384xf32>,
    %c0_14 = arith.constant 0 : index
    %c0_15 = arith.constant 0 : index
    %23 = vector.load %arg3[%c0_14, %c0_15] : memref<1x384xf32, #tpu.memory_space<vmem>>, vector<1x384xf32>
    %c0_16 = arith.constant 0 : index
    %c0_17 = arith.constant 0 : index
    %24 = vector.load %arg8[%c0_16, %c0_17] : memref<8x1xf32, #tpu.memory_space<vmem>>, vector<8x1xf32>
    %25 = vector.broadcast %23 : vector<1x384xf32> to vector<8x384xf32>
    %26 = arith.mulf %18, %25 : vector<8x384xf32>
    %cst_18 = arith.constant dense<0.000000e+00> : vector<8xf32>
    %27 = vector.multi_reduction <add>, %26, %cst_18 [1] : vector<8x384xf32> to vector<8xf32>
    %28 = vector.shape_cast %27 : vector<8xf32> to vector<8x1xf32>
    %29 = arith.addf %24, %28 : vector<8x1xf32>
    %c0_19 = arith.constant 0 : index
    %c0_20 = arith.constant 0 : index
    %30 = vector.load %arg8[%c0_19, %c0_20] : memref<8x1xf32, #tpu.memory_space<vmem>>, vector<8x1xf32>
    tpu.vector_store %arg8[%c0_19, %c0_20], %29 {strides = array<i32>} : memref<8x1xf32, #tpu.memory_space<vmem>>, vector<8x1xf32>,
    %c0_21 = arith.constant 0 : index
    %c0_22 = arith.constant 0 : index
    %31 = vector.load %arg9[%c0_21, %c0_22] : memref<8x1xf32, #tpu.memory_space<vmem>>, vector<8x1xf32>
    %32 = arith.mulf %18, %18 : vector<8x384xf32>
    %33 = vector.broadcast %23 : vector<1x384xf32> to vector<8x384xf32>
    %34 = arith.mulf %32, %33 : vector<8x384xf32>
    %cst_23 = arith.constant dense<0.000000e+00> : vector<8xf32>
    %35 = vector.multi_reduction <add>, %34, %cst_23 [1] : vector<8x384xf32> to vector<8xf32>
    %36 = vector.shape_cast %35 : vector<8xf32> to vector<8x1xf32>
    %37 = arith.addf %31, %36 : vector<8x1xf32>
    %c0_24 = arith.constant 0 : index
    %c0_25 = arith.constant 0 : index
    %38 = vector.load %arg9[%c0_24, %c0_25] : memref<8x1xf32, #tpu.memory_space<vmem>>, vector<8x1xf32>
    tpu.vector_store %arg9[%c0_24, %c0_25], %37 {strides = array<i32>} : memref<8x1xf32, #tpu.memory_space<vmem>>, vector<8x1xf32>,
    %c1_i32 = arith.constant 1 : i32
    %39 = arith.cmpi eq, %arg0, %c1_i32 : i32
    %40 = arith.extui %39 : i1 to i32
    %c0_i32_26 = arith.constant 0 : i32
    %41 = arith.cmpi ne, %40, %c0_i32_26 : i32
    scf.if %41 {
      %c0_27 = arith.constant 0 : index
      %c0_28 = arith.constant 0 : index
      %42 = vector.load %arg8[%c0_27, %c0_28] : memref<8x1xf32, #tpu.memory_space<vmem>>, vector<8x1xf32>
      %cst_29 = arith.constant 0.001953125 : f32
      %43 = vector.broadcast %cst_29 : f32 to vector<8x1xf32>
      %44 = arith.mulf %42, %43 : vector<8x1xf32>
      %c0_30 = arith.constant 0 : index
      %c0_31 = arith.constant 0 : index
      %45 = vector.load %arg9[%c0_30, %c0_31] : memref<8x1xf32, #tpu.memory_space<vmem>>, vector<8x1xf32>
      %cst_32 = arith.constant 0.001953125 : f32
      %46 = vector.broadcast %cst_32 : f32 to vector<8x1xf32>
      %47 = arith.mulf %45, %46 : vector<8x1xf32>
      %48 = arith.mulf %44, %44 : vector<8x1xf32>
      %49 = arith.subf %47, %48 : vector<8x1xf32>
      %cst_33 = arith.constant 0.000000e+00 : f32
      %50 = vector.broadcast %cst_33 : f32 to vector<8x1xf32>
      %51 = arith.maximumf %49, %50 : vector<8x1xf32>
      %c0_34 = arith.constant 0 : index
      %c0_35 = arith.constant 0 : index
      %52 = vector.load %arg4[%c0_34, %c0_35] : memref<8x1xf32, #tpu.memory_space<vmem>>, vector<8x1xf32>
      %cst_36 = arith.constant 9.99999974E-6 : f32
      %53 = vector.broadcast %cst_36 : f32 to vector<8x1xf32>
      %54 = arith.addf %51, %53 : vector<8x1xf32>
      %55 = math.rsqrt %54 : vector<8x1xf32>
      %56 = arith.mulf %52, %55 : vector<8x1xf32>
      %c0_37 = arith.constant 0 : index
      %c0_38 = arith.constant 0 : index
      %57 = vector.load %arg5[%c0_37, %c0_38] : memref<8x1xf32, #tpu.memory_space<vmem>>, vector<8x1xf32>
      %58 = arith.mulf %44, %56 : vector<8x1xf32>
      %59 = arith.subf %57, %58 : vector<8x1xf32>
      %c0_39 = arith.constant 0 : index
      %c0_40 = arith.constant 0 : index
      %c0_41 = arith.constant 0 : index
      %60 = vector.load %arg7[%c0_39, %c0_40, %c0_41] : memref<2x8x384xf32, #tpu.memory_space<vmem>>, vector<2x8x384xf32>
      %61 = vector.shape_cast %56 : vector<8x1xf32> to vector<1x8x1xf32>
      %62 = vector.broadcast %61 : vector<1x8x1xf32> to vector<2x8x384xf32>
      %63 = arith.mulf %60, %62 : vector<2x8x384xf32>
      %64 = vector.shape_cast %59 : vector<8x1xf32> to vector<1x8x1xf32>
      %65 = vector.broadcast %64 : vector<1x8x1xf32> to vector<2x8x384xf32>
      %66 = arith.addf %63, %65 : vector<2x8x384xf32>
      %cst_42 = arith.constant 0.000000e+00 : f32
      %67 = vector.broadcast %cst_42 : f32 to vector<2x8x384xf32>
      %68 = arith.cmpf ogt, %66, %67 : vector<2x8x384xf32>
      %cst_43 = arith.constant 0.000000e+00 : f32
      %69 = vector.broadcast %cst_43 : f32 to vector<2x8x384xf32>
      %70 = arith.minimumf %66, %69 : vector<2x8x384xf32>
      %71 = math.exp %70 : vector<2x8x384xf32>
      %cst_44 = arith.constant 1.000000e+00 : f32
      %72 = vector.broadcast %cst_44 : f32 to vector<2x8x384xf32>
      %73 = arith.subf %71, %72 : vector<2x8x384xf32>
      %74 = arith.select %68, %66, %73 : vector<2x8x384xi1>, vector<2x8x384xf32>
      %75 = arith.truncf %74 : vector<2x8x384xf32> to vector<2x8x384xbf16>
      %c0_45 = arith.constant 0 : index
      %c0_46 = arith.constant 0 : index
      %c0_47 = arith.constant 0 : index
      %76 = vector.load %arg6[%c0_45, %c0_46, %c0_47] : memref<2x8x384xbf16, #tpu.memory_space<vmem>>, vector<2x8x384xbf16>
      tpu.vector_store %arg6[%c0_45, %c0_46, %c0_47], %75 {strides = array<i32>} : memref<2x8x384xbf16, #tpu.memory_space<vmem>>, vector<2x8x384xbf16>,
    } else {
    }
    return
  }
  func.func @transform_0(%arg0: i32) -> (i32, i32, i32) {
    %c0_i32 = arith.constant 0 : i32
    %c0_i32_0 = arith.constant 0 : i32
    %c0_i32_1 = arith.constant 0 : i32
    return %arg0, %c0_i32, %c0_i32_0 : i32, i32, i32
  }
  func.func @transform_1(%arg0: i32) -> (i32, i32, i32) {
    %c0_i32 = arith.constant 0 : i32
    %c0_i32_0 = arith.constant 0 : i32
    %c0_i32_1 = arith.constant 0 : i32
    %c0_i32_2 = arith.constant 0 : i32
    return %c0_i32, %c0_i32_0, %c0_i32_1 : i32, i32, i32
  }
  func.func @transform_2(%arg0: i32) -> (i32, i32) {
    %c0_i32 = arith.constant 0 : i32
    %c0_i32_0 = arith.constant 0 : i32
    %c0_i32_1 = arith.constant 0 : i32
    return %c0_i32, %c0_i32_0 : i32, i32
  }
  func.func @transform_3(%arg0: i32) -> (i32, i32) {
    %c0_i32 = arith.constant 0 : i32
    %c0_i32_0 = arith.constant 0 : i32
    %c0_i32_1 = arith.constant 0 : i32
    return %c0_i32, %c0_i32_0 : i32, i32
  }
  func.func @transform_4(%arg0: i32) -> (i32, i32) {
    %c0_i32 = arith.constant 0 : i32
    %c0_i32_0 = arith.constant 0 : i32
    %c0_i32_1 = arith.constant 0 : i32
    return %c0_i32, %c0_i32_0 : i32, i32
  }
  func.func @transform_5(%arg0: i32) -> (i32, i32, i32) {
    %c0_i32 = arith.constant 0 : i32
    %c0_i32_0 = arith.constant 0 : i32
    %c0_i32_1 = arith.constant 0 : i32
    %c0_i32_2 = arith.constant 0 : i32
    return %c0_i32, %c0_i32_0, %c0_i32_1 : i32, i32, i32
  }
}

module attributes {stable_mosaic.version = 11 : i64} {
  func.func @_conv_bn_elu_fused_kernel(%arg0: i32, %arg1: memref<1x24x512xbf16, #tpu.memory_space<vmem>>, %arg2: memref<3x8x24xbf16, #tpu.memory_space<vmem>>, %arg3: memref<1x384xf32, #tpu.memory_space<vmem>>, %arg4: memref<8x1xf32, #tpu.memory_space<vmem>>, %arg5: memref<8x1xf32, #tpu.memory_space<vmem>>, %arg6: memref<2x8x384xf32, #tpu.memory_space<vmem>>, %arg7: memref<2x8x384xf32, #tpu.memory_space<vmem>>, %arg8: memref<8x1xf32, #tpu.memory_space<vmem>>, %arg9: memref<8x1xf32, #tpu.memory_space<vmem>>) attributes {dimension_semantics = [#tpu.dimension_semantics<arbitrary>], iteration_bounds = array<i64: 2>, scalar_prefetch = 0 : i64, scratch_operands = 3 : i64, tpu.core_type = #tpu.core_type<tc>, window_params = [{transform_indices = @transform_0, window_bounds = array<i64: 1, 24, 512>}, {pipeline_mode = #tpu.pipeline_mode<synchronous>, transform_indices = @transform_1, window_bounds = array<i64: 3, 8, 24>}, {pipeline_mode = #tpu.pipeline_mode<synchronous>, transform_indices = @transform_2, window_bounds = array<i64: 1, 384>}, {pipeline_mode = #tpu.pipeline_mode<synchronous>, transform_indices = @transform_3, window_bounds = array<i64: 8, 1>}, {pipeline_mode = #tpu.pipeline_mode<synchronous>, transform_indices = @transform_4, window_bounds = array<i64: 8, 1>}, {pipeline_mode = #tpu.pipeline_mode<synchronous>, transform_indices = @transform_5, window_bounds = array<i64: 2, 8, 384>}]} {
    %c0_i32 = arith.constant 0 : i32
    %0 = arith.cmpi eq, %arg0, %c0_i32 : i32
    %1 = arith.extui %0 : i1 to i32
    %c0_i32_0 = arith.constant 0 : i32
    %2 = arith.cmpi ne, %1, %c0_i32_0 : i32
    scf.if %2 {
      %cst_27 = arith.constant 0.000000e+00 : f32
      %42 = vector.broadcast %cst_27 : f32 to vector<8x1xf32>
      %c0_28 = arith.constant 0 : index
      %c0_29 = arith.constant 0 : index
      %43 = vector.load %arg8[%c0_28, %c0_29] : memref<8x1xf32, #tpu.memory_space<vmem>>, vector<8x1xf32>
      tpu.vector_store %arg8[%c0_28, %c0_29], %42 {strides = array<i32>} : memref<8x1xf32, #tpu.memory_space<vmem>>, vector<8x1xf32>,
      %cst_30 = arith.constant 0.000000e+00 : f32
      %44 = vector.broadcast %cst_30 : f32 to vector<8x1xf32>
      %c0_31 = arith.constant 0 : index
      %c0_32 = arith.constant 0 : index
      %45 = vector.load %arg9[%c0_31, %c0_32] : memref<8x1xf32, #tpu.memory_space<vmem>>, vector<8x1xf32>
      tpu.vector_store %arg9[%c0_31, %c0_32], %44 {strides = array<i32>} : memref<8x1xf32, #tpu.memory_space<vmem>>, vector<8x1xf32>,
    } else {
    }
    %c0 = arith.constant 0 : index
    %c0_1 = arith.constant 0 : index
    %c0_2 = arith.constant 0 : index
    %3 = vector.load %arg1[%c0, %c0_1, %c0_2] : memref<1x24x512xbf16, #tpu.memory_space<vmem>>, vector<1x24x512xbf16>
    %4 = vector.shape_cast %3 : vector<1x24x512xbf16> to vector<24x512xbf16>
    %c0_3 = arith.constant 0 : index
    %c0_4 = arith.constant 0 : index
    %c0_5 = arith.constant 0 : index
    %5 = vector.load %arg2[%c0_3, %c0_4, %c0_5] : memref<3x8x24xbf16, #tpu.memory_space<vmem>>, vector<1x8x24xbf16>
    %6 = vector.shape_cast %5 : vector<1x8x24xbf16> to vector<8x24xbf16>
    %7 = vector.extract_strided_slice %4 {offsets = [0, 0], sizes = [24, 384], strides = [1, 1]} : vector<24x512xbf16> to vector<24x384xbf16>
    %cst = arith.constant dense<0.000000e+00> : vector<8x384xf32>
    %8 = tpu.matmul %6, %7, %cst {dimension_numbers = #tpu.dot_dimension_numbers<[1], [0], [0], [1], [0, 0, 1, 1], [], []>} : vector<8x24xbf16>, vector<24x384xbf16>, vector<8x384xf32> -> vector<8x384xf32>
    %c1 = arith.constant 1 : index
    %c0_6 = arith.constant 0 : index
    %c0_7 = arith.constant 0 : index
    %9 = vector.load %arg2[%c1, %c0_6, %c0_7] : memref<3x8x24xbf16, #tpu.memory_space<vmem>>, vector<1x8x24xbf16>
    %10 = vector.shape_cast %9 : vector<1x8x24xbf16> to vector<8x24xbf16>
    %11 = vector.extract_strided_slice %4 {offsets = [0, 1], sizes = [24, 384], strides = [1, 1]} : vector<24x512xbf16> to vector<24x384xbf16>
    %cst_8 = arith.constant dense<0.000000e+00> : vector<8x384xf32>
    %12 = tpu.matmul %10, %11, %cst_8 {dimension_numbers = #tpu.dot_dimension_numbers<[1], [0], [0], [1], [0, 0, 1, 1], [], []>} : vector<8x24xbf16>, vector<24x384xbf16>, vector<8x384xf32> -> vector<8x384xf32>
    %13 = arith.addf %8, %12 : vector<8x384xf32>
    %c2 = arith.constant 2 : index
    %c0_9 = arith.constant 0 : index
    %c0_10 = arith.constant 0 : index
    %14 = vector.load %arg2[%c2, %c0_9, %c0_10] : memref<3x8x24xbf16, #tpu.memory_space<vmem>>, vector<1x8x24xbf16>
    %15 = vector.shape_cast %14 : vector<1x8x24xbf16> to vector<8x24xbf16>
    %16 = vector.extract_strided_slice %4 {offsets = [0, 2], sizes = [24, 384], strides = [1, 1]} : vector<24x512xbf16> to vector<24x384xbf16>
    %cst_11 = arith.constant dense<0.000000e+00> : vector<8x384xf32>
    %17 = tpu.matmul %15, %16, %cst_11 {dimension_numbers = #tpu.dot_dimension_numbers<[1], [0], [0], [1], [0, 0, 1, 1], [], []>} : vector<8x24xbf16>, vector<24x384xbf16>, vector<8x384xf32> -> vector<8x384xf32>
    %18 = arith.addf %13, %17 : vector<8x384xf32>
    %19 = arith.index_cast %arg0 : i32 to index
    %c0_12 = arith.constant 0 : index
    %c0_13 = arith.constant 0 : index
    %20 = vector.load %arg7[%19, %c0_12, %c0_13] : memref<2x8x384xf32, #tpu.memory_space<vmem>>, vector<1x8x384xf32>
    %21 = vector.shape_cast %20 : vector<1x8x384xf32> to vector<8x384xf32>
    %22 = vector.shape_cast %18 : vector<8x384xf32> to vector<1x8x384xf32>
    tpu.vector_store %arg7[%19, %c0_12, %c0_13], %22 {strides = array<i32>} : memref<2x8x384xf32, #tpu.memory_space<vmem>>, vector<1x8x384xf32>,
    %c0_14 = arith.constant 0 : index
    %c0_15 = arith.constant 0 : index
    %23 = vector.load %arg3[%c0_14, %c0_15] : memref<1x384xf32, #tpu.memory_space<vmem>>, vector<1x384xf32>
    %c0_16 = arith.constant 0 : index
    %c0_17 = arith.constant 0 : index
    %24 = vector.load %arg8[%c0_16, %c0_17] : memref<8x1xf32, #tpu.memory_space<vmem>>, vector<8x1xf32>
    %25 = vector.broadcast %23 : vector<1x384xf32> to vector<8x384xf32>
    %26 = arith.mulf %18, %25 : vector<8x384xf32>
    %cst_18 = arith.constant dense<0.000000e+00> : vector<8xf32>
    %27 = vector.multi_reduction <add>, %26, %cst_18 [1] : vector<8x384xf32> to vector<8xf32>
    %28 = vector.shape_cast %27 : vector<8xf32> to vector<8x1xf32>
    %29 = arith.addf %24, %28 : vector<8x1xf32>
    %c0_19 = arith.constant 0 : index
    %c0_20 = arith.constant 0 : index
    %30 = vector.load %arg8[%c0_19, %c0_20] : memref<8x1xf32, #tpu.memory_space<vmem>>, vector<8x1xf32>
    tpu.vector_store %arg8[%c0_19, %c0_20], %29 {strides = array<i32>} : memref<8x1xf32, #tpu.memory_space<vmem>>, vector<8x1xf32>,
    %c0_21 = arith.constant 0 : index
    %c0_22 = arith.constant 0 : index
    %31 = vector.load %arg9[%c0_21, %c0_22] : memref<8x1xf32, #tpu.memory_space<vmem>>, vector<8x1xf32>
    %32 = arith.mulf %18, %18 : vector<8x384xf32>
    %33 = vector.broadcast %23 : vector<1x384xf32> to vector<8x384xf32>
    %34 = arith.mulf %32, %33 : vector<8x384xf32>
    %cst_23 = arith.constant dense<0.000000e+00> : vector<8xf32>
    %35 = vector.multi_reduction <add>, %34, %cst_23 [1] : vector<8x384xf32> to vector<8xf32>
    %36 = vector.shape_cast %35 : vector<8xf32> to vector<8x1xf32>
    %37 = arith.addf %31, %36 : vector<8x1xf32>
    %c0_24 = arith.constant 0 : index
    %c0_25 = arith.constant 0 : index
    %38 = vector.load %arg9[%c0_24, %c0_25] : memref<8x1xf32, #tpu.memory_space<vmem>>, vector<8x1xf32>
    tpu.vector_store %arg9[%c0_24, %c0_25], %37 {strides = array<i32>} : memref<8x1xf32, #tpu.memory_space<vmem>>, vector<8x1xf32>,
    %c1_i32 = arith.constant 1 : i32
    %39 = arith.cmpi eq, %arg0, %c1_i32 : i32
    %40 = arith.extui %39 : i1 to i32
    %c0_i32_26 = arith.constant 0 : i32
    %41 = arith.cmpi ne, %40, %c0_i32_26 : i32
    scf.if %41 {
      %c0_27 = arith.constant 0 : index
      %c0_28 = arith.constant 0 : index
      %42 = vector.load %arg8[%c0_27, %c0_28] : memref<8x1xf32, #tpu.memory_space<vmem>>, vector<8x1xf32>
      %cst_29 = arith.constant 7.812500e-03 : f32
      %43 = vector.broadcast %cst_29 : f32 to vector<8x1xf32>
      %44 = arith.mulf %42, %43 : vector<8x1xf32>
      %c0_30 = arith.constant 0 : index
      %c0_31 = arith.constant 0 : index
      %45 = vector.load %arg9[%c0_30, %c0_31] : memref<8x1xf32, #tpu.memory_space<vmem>>, vector<8x1xf32>
      %cst_32 = arith.constant 7.812500e-03 : f32
      %46 = vector.broadcast %cst_32 : f32 to vector<8x1xf32>
      %47 = arith.mulf %45, %46 : vector<8x1xf32>
      %48 = arith.mulf %44, %44 : vector<8x1xf32>
      %49 = arith.subf %47, %48 : vector<8x1xf32>
      %cst_33 = arith.constant 0.000000e+00 : f32
      %50 = vector.broadcast %cst_33 : f32 to vector<8x1xf32>
      %51 = arith.maximumf %49, %50 : vector<8x1xf32>
      %c0_34 = arith.constant 0 : index
      %c0_35 = arith.constant 0 : index
      %52 = vector.load %arg4[%c0_34, %c0_35] : memref<8x1xf32, #tpu.memory_space<vmem>>, vector<8x1xf32>
      %cst_36 = arith.constant 9.99999974E-6 : f32
      %53 = vector.broadcast %cst_36 : f32 to vector<8x1xf32>
      %54 = arith.addf %51, %53 : vector<8x1xf32>
      %55 = math.rsqrt %54 : vector<8x1xf32>
      %56 = arith.mulf %52, %55 : vector<8x1xf32>
      %c0_37 = arith.constant 0 : index
      %c0_38 = arith.constant 0 : index
      %57 = vector.load %arg5[%c0_37, %c0_38] : memref<8x1xf32, #tpu.memory_space<vmem>>, vector<8x1xf32>
      %58 = arith.mulf %44, %56 : vector<8x1xf32>
      %59 = arith.subf %57, %58 : vector<8x1xf32>
      %c0_39 = arith.constant 0 : index
      %c0_40 = arith.constant 0 : index
      %c0_41 = arith.constant 0 : index
      %60 = vector.load %arg7[%c0_39, %c0_40, %c0_41] : memref<2x8x384xf32, #tpu.memory_space<vmem>>, vector<2x8x384xf32>
      %61 = vector.shape_cast %56 : vector<8x1xf32> to vector<1x8x1xf32>
      %62 = vector.broadcast %61 : vector<1x8x1xf32> to vector<2x8x384xf32>
      %63 = arith.mulf %60, %62 : vector<2x8x384xf32>
      %64 = vector.shape_cast %59 : vector<8x1xf32> to vector<1x8x1xf32>
      %65 = vector.broadcast %64 : vector<1x8x1xf32> to vector<2x8x384xf32>
      %66 = arith.addf %63, %65 : vector<2x8x384xf32>
      %cst_42 = arith.constant 0.000000e+00 : f32
      %67 = vector.broadcast %cst_42 : f32 to vector<2x8x384xf32>
      %68 = arith.cmpf ogt, %66, %67 : vector<2x8x384xf32>
      %cst_43 = arith.constant 0.000000e+00 : f32
      %69 = vector.broadcast %cst_43 : f32 to vector<2x8x384xf32>
      %70 = arith.minimumf %66, %69 : vector<2x8x384xf32>
      %71 = math.exp %70 : vector<2x8x384xf32>
      %cst_44 = arith.constant 1.000000e+00 : f32
      %72 = vector.broadcast %cst_44 : f32 to vector<2x8x384xf32>
      %73 = arith.subf %71, %72 : vector<2x8x384xf32>
      %74 = arith.select %68, %66, %73 : vector<2x8x384xi1>, vector<2x8x384xf32>
      %c0_45 = arith.constant 0 : index
      %c0_46 = arith.constant 0 : index
      %c0_47 = arith.constant 0 : index
      %75 = vector.load %arg6[%c0_45, %c0_46, %c0_47] : memref<2x8x384xf32, #tpu.memory_space<vmem>>, vector<2x8x384xf32>
      tpu.vector_store %arg6[%c0_45, %c0_46, %c0_47], %74 {strides = array<i32>} : memref<2x8x384xf32, #tpu.memory_space<vmem>>, vector<2x8x384xf32>,
    } else {
    }
    return
  }
  func.func @transform_0(%arg0: i32) -> (i32, i32, i32) {
    %c0_i32 = arith.constant 0 : i32
    %c0_i32_0 = arith.constant 0 : i32
    %c0_i32_1 = arith.constant 0 : i32
    return %arg0, %c0_i32, %c0_i32_0 : i32, i32, i32
  }
  func.func @transform_1(%arg0: i32) -> (i32, i32, i32) {
    %c0_i32 = arith.constant 0 : i32
    %c0_i32_0 = arith.constant 0 : i32
    %c0_i32_1 = arith.constant 0 : i32
    %c0_i32_2 = arith.constant 0 : i32
    return %c0_i32, %c0_i32_0, %c0_i32_1 : i32, i32, i32
  }
  func.func @transform_2(%arg0: i32) -> (i32, i32) {
    %c0_i32 = arith.constant 0 : i32
    %c0_i32_0 = arith.constant 0 : i32
    %c0_i32_1 = arith.constant 0 : i32
    return %c0_i32, %c0_i32_0 : i32, i32
  }
  func.func @transform_3(%arg0: i32) -> (i32, i32) {
    %c0_i32 = arith.constant 0 : i32
    %c0_i32_0 = arith.constant 0 : i32
    %c0_i32_1 = arith.constant 0 : i32
    return %c0_i32, %c0_i32_0 : i32, i32
  }
  func.func @transform_4(%arg0: i32) -> (i32, i32) {
    %c0_i32 = arith.constant 0 : i32
    %c0_i32_0 = arith.constant 0 : i32
    %c0_i32_1 = arith.constant 0 : i32
    return %c0_i32, %c0_i32_0 : i32, i32
  }
  func.func @transform_5(%arg0: i32) -> (i32, i32, i32) {
    %c0_i32 = arith.constant 0 : i32
    %c0_i32_0 = arith.constant 0 : i32
    %c0_i32_1 = arith.constant 0 : i32
    %c0_i32_2 = arith.constant 0 : i32
    return %c0_i32, %c0_i32_0, %c0_i32_1 : i32, i32, i32
  }
}

</mosaic_0001>

<llo_original>
// kernel: convblock_forward.3
$region0: #{convblock_forward.3}
  #allocation0 [shape = 'u32[]', space=smem, size = 0x4, offset = 0x4, fixed_abs, tag = 'smem constant byte address 0x4 - core index']
  #allocation1 [shape = 'u32[144,128]{1,0:T(1,128)}', space=vmem, size = 0x12000, scoped, tag = 'internal scratch']
  #allocation2 [shape = 'f32[2,8,384]{2,1,0:T(8,128)}', space=vmem, size = 0x6000, scoped, tag = 'scratch operand']
  #allocation3 [shape = 'f32[8,1]{1,0:T(8,128)}', space=vmem, size = 0x1000, scoped, tag = 'scratch operand']
  #allocation4 [shape = 'f32[8,1]{1,0:T(8,128)}', space=vmem, size = 0x1000, scoped, tag = 'scratch operand']
  %s0 = inlined_call_operand.vmem [shape: bf16[2,24,512], index: 0, kind: input, shape index: {}]
  %s1 = inlined_call_operand.vmem [shape: bf16[3,8,24], index: 1, kind: input, shape index: {}]
  %s2 = inlined_call_operand.vmem [shape: f32[1,384], index: 2, kind: input, shape index: {}]
  %s3 = inlined_call_operand.vmem [shape: f32[8,1], index: 3, kind: input, shape index: {}]
  %s4 = inlined_call_operand.vmem [shape: f32[8,1], index: 4, kind: input, shape index: {}]
  %s5 = inlined_call_operand.vmem [shape: f32[2,8,384], index: 5, kind: output, shape index: {}]
  %s6 = sld [smem:[#allocation0]]
  $region61: #{convblock_forward.3} parent=0
    _
  %s8 = ssub.s32 1, %s6
  %s9 = scalar_select 0, %s8, %s6
  loop: start=0, step=1, limit=4
  $region2: #{convblock_forward.3} parent=0 // loop_pre_header
    _
  $region3: #{convblock_forward.3} parent=0 // loop_header
    %s11 = sphi 0, %s15
    %p12 = scmp.ge.s32.totalorder %s11, 4
    %s21 = sphi 0, %s23
    %s24 = sphi 0, %s21
    %s25 = sphi 0, %s24
    %s41 = sphi 0, %s25
    %s45 = sphi 0, %s45
    %s47 = sphi 0, %s45
    %s48 = sphi 0, %s47
    %s62 = sphi 0, %s48
    %s66 = sphi 0, %s66
    %s68 = sphi 0, %s66
    %s69 = sphi 0, %s68
    %s83 = sphi 0, %s69
    %s87 = sphi 0, %s87
    %s89 = sphi 0, %s87
    %s90 = sphi 0, %s89
    %s104 = sphi 0, %s90
    %s108 = sphi 0, %s108
    %s110 = sphi 0, %s108
    %s111 = sphi 0, %s110
    %s125 = sphi 0, %s111
    %s129 = sphi 0, %s129
    %s131 = sphi 0, %s129
    %s132 = sphi 0, %s131
    %s146 = sphi 0, %s132
  $region4: #{convblock_forward.3} parent=0 // loop_header_branch
    %14 = sbr.rel (%p12) target = $region8
  $region5: #{convblock_forward.3} parent=0 // loop_body
    %s16 = ssub.s32 %s11, 1
    %s17 = ssub.s32 %s11, 2
    %s18 = sadd.s32 %s11, 1
    %s19 = ssub.s32 %s11, %s18
    %p20 = scmp.eq.s32.totalorder %s19, 0
    %s22 = sadd.s32 %s21, 1
    %s23 = scalar_select %p20, %s21, %s22
    %p26 = pneg %p20
    %p27 = scmp.eq.s32.totalorder %s11, 1
    %p28 = por %p26, %p27
    %p29 = scmp.ne.s32.totalorder %s21, %s24
    %p30 = scmp.eq.s32.totalorder %s11, 0
    %p31 = por %p29, %p30
    %p32 = scmp.ne.s32.totalorder %s21, %s24
    %p33 = scmp.eq.s32.totalorder %s16, 1
    %p34 = por %p32, %p33
    %p35 = scmp.ne.s32.totalorder %s24, %s25
    %p36 = scmp.eq.s32.totalorder %s16, 0
    %p37 = por %p35, %p36
    %p38 = scmp.ne.s32.totalorder %s24, %s25
    %p39 = scmp.eq.s32.totalorder %s17, 1
    %p40 = por %p38, %p39
    %p42 = scmp.ne.s32.totalorder %s25, %s41
    %p43 = scmp.eq.s32.totalorder %s17, 0
    %p44 = por %p42, %p43
    %s46 = sadd.s32 %s45, 1
    %p49 = scmp.eq.s32.totalorder %s11, 1
    %p50 = scmp.ne.s32.totalorder %s45, %s47
    %p51 = scmp.eq.s32.totalorder %s11, 0
    %p52 = por %p50, %p51
    %p53 = scmp.ne.s32.totalorder %s45, %s47
    %p54 = scmp.eq.s32.totalorder %s16, 1
    %p55 = por %p53, %p54
    %p56 = scmp.ne.s32.totalorder %s47, %s48
    %p57 = scmp.eq.s32.totalorder %s16, 0
    %p58 = por %p56, %p57
    %p59 = scmp.ne.s32.totalorder %s47, %s48
    %p60 = scmp.eq.s32.totalorder %s17, 1
    %p61 = por %p59, %p60
    %p63 = scmp.ne.s32.totalorder %s48, %s62
    %p64 = scmp.eq.s32.totalorder %s17, 0
    %p65 = por %p63, %p64
    %s67 = sadd.s32 %s66, 1
    %p70 = scmp.eq.s32.totalorder %s11, 1
    %p71 = scmp.ne.s32.totalorder %s66, %s68
    %p72 = scmp.eq.s32.totalorder %s11, 0
    %p73 = por %p71, %p72
    %p74 = scmp.ne.s32.totalorder %s66, %s68
    %p75 = scmp.eq.s32.totalorder %s16, 1
    %p76 = por %p74, %p75
    %p77 = scmp.ne.s32.totalorder %s68, %s69
    %p78 = scmp.eq.s32.totalorder %s16, 0
    %p79 = por %p77, %p78
    %p80 = scmp.ne.s32.totalorder %s68, %s69
    %p81 = scmp.eq.s32.totalorder %s17, 1
    %p82 = por %p80, %p81
    %p84 = scmp.ne.s32.totalorder %s69, %s83
    %p85 = scmp.eq.s32.totalorder %s17, 0
    %p86 = por %p84, %p85
    %s88 = sadd.s32 %s87, 1
    %p91 = scmp.eq.s32.totalorder %s11, 1
    %p92 = scmp.ne.s32.totalorder %s87, %s89
    %p93 = scmp.eq.s32.totalorder %s11, 0
    %p94 = por %p92, %p93
    %p95 = scmp.ne.s32.totalorder %s87, %s89
    %p96 = scmp.eq.s32.totalorder %s16, 1
    %p97 = por %p95, %p96
    %p98 = scmp.ne.s32.totalorder %s89, %s90
    %p99 = scmp.eq.s32.totalorder %s16, 0
    %p100 = por %p98, %p99
    %p101 = scmp.ne.s32.totalorder %s89, %s90
    %p102 = scmp.eq.s32.totalorder %s17, 1
    %p103 = por %p101, %p102
    %p105 = scmp.ne.s32.totalorder %s90, %s104
    %p106 = scmp.eq.s32.totalorder %s17, 0
    %p107 = por %p105, %p106
    %s109 = sadd.s32 %s108, 1
    %p112 = scmp.eq.s32.totalorder %s11, 1
    %p113 = scmp.ne.s32.totalorder %s108, %s110
    %p114 = scmp.eq.s32.totalorder %s11, 0
    %p115 = por %p113, %p114
    %p116 = scmp.ne.s32.totalorder %s108, %s110
    %p117 = scmp.eq.s32.totalorder %s16, 1
    %p118 = por %p116, %p117
    %p119 = scmp.ne.s32.totalorder %s110, %s111
    %p120 = scmp.eq.s32.totalorder %s16, 0
    %p121 = por %p119, %p120
    %p122 = scmp.ne.s32.totalorder %s110, %s111
    %p123 = scmp.eq.s32.totalorder %s17, 1
    %p124 = por %p122, %p123
    %p126 = scmp.ne.s32.totalorder %s111, %s125
    %p127 = scmp.eq.s32.totalorder %s17, 0
    %p128 = por %p126, %p127
    %s130 = sadd.s32 %s129, 1
    %p133 = scmp.eq.s32.totalorder %s11, 1
    %p134 = scmp.ne.s32.totalorder %s129, %s131
    %p135 = scmp.eq.s32.totalorder %s11, 0
    %p136 = por %p134, %p135
    %p137 = scmp.ne.s32.totalorder %s129, %s131
    %p138 = scmp.eq.s32.totalorder %s16, 1
    %p139 = por %p137, %p138
    %p140 = scmp.ne.s32.totalorder %s131, %s132
    %p141 = scmp.eq.s32.totalorder %s16, 0
    %p142 = por %p140, %p141
    %p143 = scmp.ne.s32.totalorder %s131, %s132
    %p144 = scmp.eq.s32.totalorder %s17, 1
    %p145 = por %p143, %p144
    %p147 = scmp.ne.s32.totalorder %s132, %s146
    %p148 = scmp.eq.s32.totalorder %s17, 0
    %p149 = por %p147, %p148
    %p150 = scmp.le.s32.totalorder 1, %s11
    %p151 = scmp.lt.s32.totalorder %s11, 3
    %p152 = pnand %p150, %p151
    %p153 = pneg %p152
    // Predicated region
    $region9: #{convblock_forward.3} parent=5 // pred_check
      _
    $region10: #{convblock_forward.3} parent=5 // pred_check_branch
      %155 = sbr.rel (%p152) target = $region12
    $region11: #{convblock_forward.3} parent=5 // pred_region
      %s156 = ssub.s32 %s11, 1
      // Predicated region
      $region13: #{convblock_forward.3} parent=11 // pred_check
        %p157 = pneg %p58
      $region14: #{convblock_forward.3} parent=11 // pred_check_branch
        %159 = sbr.rel (%p157) target = $region16
      $region15: #{convblock_forward.3} parent=11 // pred_region
        _
      $region16: #{convblock_forward.3} parent=11 // pred_fallthru
        _
      // Predicated region
      $region17: #{convblock_forward.3} parent=11 // pred_check
        %p160 = pneg %p79
      $region18: #{convblock_forward.3} parent=11 // pred_check_branch
        %162 = sbr.rel (%p160) target = $region20
      $region19: #{convblock_forward.3} parent=11 // pred_region
        _
      $region20: #{convblock_forward.3} parent=11 // pred_fallthru
        _
      // Predicated region
      $region21: #{convblock_forward.3} parent=11 // pred_check
        %p163 = pneg %p100
      $region22: #{convblock_forward.3} parent=11 // pred_check_branch
        %165 = sbr.rel (%p163) target = $region24
      $region23: #{convblock_forward.3} parent=11 // pred_region
        _
      $region24: #{convblock_forward.3} parent=11 // pred_fallthru
        _
      // Predicated region
      $region25: #{convblock_forward.3} parent=11 // pred_check
        %p166 = pneg %p121
      $region26: #{convblock_forward.3} parent=11 // pred_check_branch
        %168 = sbr.rel (%p166) target = $region28
      $region27: #{convblock_forward.3} parent=11 // pred_region
        _
      $region28: #{convblock_forward.3} parent=11 // pred_fallthru
        _
    $region12: #{convblock_forward.3} parent=5 // pred_fallthru
      _
    %p169 = scmp.lt.s32.totalorder %s11, 2
    // Predicated region
    $region29: #{convblock_forward.3} parent=5 // pred_check
      %p170 = pneg %p169
    $region30: #{convblock_forward.3} parent=5 // pred_check_branch
      %172 = sbr.rel (%p170) target = $region32
    $region31: #{convblock_forward.3} parent=5 // pred_region
      // Predicated region
      $region33: #{convblock_forward.3} parent=31 // pred_check
        %p173 = pneg %p31
      $region34: #{convblock_forward.3} parent=31 // pred_check_branch
        %175 = sbr.rel (%p173) target = $region36
      $region35: #{convblock_forward.3} parent=31 // pred_region
        %p176 = scmp.lt.s32.totalorder %s11, 1
        %s177 = scalar_select %p176, %s11, 1
        %s178 = smul.addr %s177, 12
        %s179 = smul.addr %s178, 4
        %s180 = scalar_lea.vmem %s0, %s179
      $region36: #{convblock_forward.3} parent=31 // pred_fallthru
        _
    $region32: #{convblock_forward.3} parent=5 // pred_fallthru
      _
    %p181 = scmp.le.s32.totalorder 1, %s11
    %p182 = scmp.lt.s32.totalorder %s11, 3
    %p183 = pnand %p181, %p182
    %p184 = pneg %p183
    // Predicated region
    $region37: #{convblock_forward.3} parent=5 // pred_check
      _
    $region38: #{convblock_forward.3} parent=5 // pred_check_branch
      %186 = sbr.rel (%p183) target = $region40
    $region39: #{convblock_forward.3} parent=5 // pred_region
      %s187 = ssub.s32 %s11, 1
      %p188 = scmp.lt.s32.totalorder %s16, 1
      %s189 = scalar_select %p188, %s16, 1
      %s190 = smul.addr %s189, 12
      %s191 = smul.addr %s190, 4
      %s192 = scalar_lea.vmem %s0, %s191
      %p193 = pneg %p37
      %p194 = pneg %p34
      %p195 = pneg %p58
      %p196 = pneg %p55
      %p197 = pneg %p79
      %p198 = pneg %p76
      %p199 = pneg %p100
      %p200 = pneg %p97
      %p201 = pneg %p121
      %p202 = pneg %p118
      %p203 = pneg %p142
      %p204 = pneg %p139
      %p205 = scmp.lt.s32.totalorder %s16, 1
      %s206 = scalar_select %p205, %s16, 1
      %s207 = smul.addr %s206, 12
      %s208 = smul.addr %s207, 4
      %s209 = scalar_lea.vmem %s0, %s208
      %p211 = scmp.eq.s32.totalorder %s16, 0
      // Predicated region
      $region41: #{convblock_forward.3} parent=39 // pred_check
        %p212 = pneg %p211
      $region42: #{convblock_forward.3} parent=39 // pred_check_branch
        %214 = sbr.rel (%p212) target = $region44
      $region43: #{convblock_forward.3} parent=39 // pred_region
        %vm215 = vcmask 7168
        %216 = vst.msk [vmem:[#allocation3] sm:$0xff] %vm215, 0.0
        %217 = vst.msk [vmem:[#allocation4] sm:$0xff] %vm215, 0.0
      $region44: #{convblock_forward.3} parent=39 // pred_fallthru
        _
      %v218 = vld [vmem:[%s209] sm:$0xff]
      %v219 = vld [vmem:[%s209 + $0x8] sm:$0xff]
      %v220 = vld [vmem:[%s209 + $0x10] sm:$0xff]
      %v221 = vld [vmem:[%s209 + $0x18] sm:$0xff]
      %v222 = vld [vmem:[%s209 + $0x20] sm:$0xff]
      %v223 = vld [vmem:[%s209 + $0x28] sm:$0xff]
      %v224 = vld [vmem:[%s1] sm:$0xf]
      %s225 = scalar_lea.vmem %s1, 4
      %v226 = vld [vmem:[%s225] sm:$0xf]
      %v233 = vunpack.c.l.b16 %v218
      %v234 = vunpack.c.h.b16 %v218
      %v235 = vunpack.c.l.b16 %v219
      %v236 = vunpack.c.h.b16 %v219
      %v237 = vunpack.c.l.b16 %v220
      %v238 = vunpack.c.h.b16 %v220
      %v239 = vunpack.c.l.b16 %v221
      %v240 = vunpack.c.h.b16 %v221
      %v241 = vunpack.c.l.b16 %v222
      %v242 = vunpack.c.h.b16 %v222
      %v243 = vunpack.c.l.b16 %v223
      %v244 = vunpack.c.h.b16 %v223
      %v245 = vpack.c.b16 %v237, %v233
      %v246 = vpack.c.b16 %v238, %v234
      %v247 = vpack.c.b16 %v239, %v235
      %v248 = vpack.c.b16 %v240, %v236
      %v249 = vpack.c.b16 %v241, %v241
      %v250 = vpack.c.b16 %v242, %v242
      %v251 = vpack.c.b16 %v243, %v243
      %v252 = vpack.c.b16 %v244, %v244
      %253 = vrot.lane.b32.xlu0 %v245, 127
      %v254 = vpop.permute.xlu0 %253
      %255 = vrot.lane.b32.xlu0 %v246, 127
      %v256 = vpop.permute.xlu0 %255
      %257 = vrot.lane.b32.xlu0 %v247, 127
      %v258 = vpop.permute.xlu0 %257
      %259 = vrot.lane.b32.xlu0 %v248, 127
      %v260 = vpop.permute.xlu0 %259
      %261 = vrot.lane.b32.xlu0 %v249, 127
      %v262 = vpop.permute.xlu0 %261
      %263 = vrot.lane.b32.xlu0 %v250, 127
      %v264 = vpop.permute.xlu0 %263
      %265 = vrot.lane.b32.xlu0 %v251, 127
      %v266 = vpop.permute.xlu0 %265
      %267 = vrot.lane.b32.xlu0 %v252, 127
      %v268 = vpop.permute.xlu0 %267
      %vm269 = vcmask 1039360
      %v270 = vsel %vm269, %v254, %v256
      %v271 = vsel %vm269, %v256, %v258
      %v272 = vsel %vm269, %v258, %v260
      %v273 = vsel %vm269, %v262, %v264
      %v274 = vsel %vm269, %v264, %v266
      %v275 = vsel %vm269, %v266, %v268
      %vm279 = vcmask 195584
      %v281 = vsel %vm279, %v226, 0
      %vm283 = vcmask 1043456
      %v285 = vsel %vm283, %v273, 0
      %v288 = vsel %vm283, %v274, 0
      %v291 = vsel %vm283, %v275, 0
      %293 = vmatprep.subr.bf16.mxu0 0
      %294 = vmatpush1.bf16.msra.mxu0 0
      %295 = vmatprep.subr.bf16.mxu0 0
      %296 = vmatpush1.bf16.msra.mxu0 0
      %297 = vmatprep.subr.bf16.mxu0 0
      %298 = vmatpush1.bf16.msra.mxu0 0
      %299 = vmatprep.subr.bf16.mxu0 0
      %300 = vmatpush1.bf16.msra.mxu0 0
      %301 = vmatprep.subr.bf16.mxu0 0
      %302 = vmatpush1.bf16.msra.mxu0 0
      %303 = vmatprep.subr.bf16.mxu0 0
      %304 = vmatpush1.bf16.msra.mxu0 0
      %305 = vmatprep.subr.bf16.mxu0 %v288
      %306 = vmatpush1.bf16.msra.mxu0 %v285
      %307 = vmatprep.subr.bf16.mxu0 %v271
      %308 = vmatpush1.bf16.msra.mxu0 %v270
      %309 = vmatprep.subr.bf16.mxu0 0
      %310 = vmatpush2.bf16.msra.mxu0 0
      %311 = vmatprep.subr.bf16.mxu0 0
      %312 = vmatpush2.bf16.msra.mxu0 0
      %313 = vmatprep.subr.bf16.mxu0 0
      %314 = vmatpush2.bf16.msra.mxu0 0
      %315 = vmatprep.subr.bf16.mxu0 0
      %316 = vmatpush2.bf16.msra.mxu0 0
      %317 = vmatprep.subr.bf16.mxu0 0
      %318 = vmatpush2.bf16.msra.mxu0 0
      %319 = vmatprep.subr.bf16.mxu0 0
      %320 = vmatpush2.bf16.msra.mxu0 0
      %321 = vmatprep.subr.bf16.mxu0 0
      %322 = vmatpush2.bf16.msra.mxu0 0
      %323 = vmatprep.subr.bf16.mxu0 0
      %324 = vmatpush2.bf16.msra.mxu0 0
      %325 = vmatprep.mubr.bf16.mxu0 0
      %326 = vmatmul.mubr.bf16.gmra.mxu0 %v281
      %v327 = vpop.f32.mrf.mxu0
      %v328 = vadd.f32 0.0, %v327
      %v329 = vpop.f32.mrf.mxu0
      %v330 = vadd.f32 0.0, %v329
      %v331 = vpop.f32.mrf.mxu0
      %v332 = vpop.f32.mrf.mxu0
      %333 = vdwg.mxu0
      %334 = vmatprep.subr.bf16.mxu0 0
      %335 = vmatpush1.bf16.msra.mxu0 0
      %336 = vmatprep.subr.bf16.mxu0 0
      %337 = vmatpush1.bf16.msra.mxu0 0
      %338 = vmatprep.subr.bf16.mxu0 0
      %339 = vmatpush1.bf16.msra.mxu0 0
      %340 = vmatprep.subr.bf16.mxu0 0
      %341 = vmatpush1.bf16.msra.mxu0 0
      %342 = vmatprep.subr.bf16.mxu0 0
      %343 = vmatpush1.bf16.msra.mxu0 0
      %344 = vmatprep.subr.bf16.mxu0 0
      %345 = vmatpush1.bf16.msra.mxu0 0
      %346 = vmatprep.subr.bf16.mxu0 0
      %347 = vmatpush1.bf16.msra.mxu0 %v291
      %348 = vmatprep.subr.bf16.mxu0 0
      %349 = vmatpush1.bf16.msra.mxu0 %v272
      %350 = vmatprep.subr.bf16.mxu0 0
      %351 = vmatpush2.bf16.msra.mxu0 0
      %352 = vmatprep.subr.bf16.mxu0 0
      %353 = vmatpush2.bf16.msra.mxu0 0
      %354 = vmatprep.subr.bf16.mxu0 0
      %355 = vmatpush2.bf16.msra.mxu0 0
      %356 = vmatprep.subr.bf16.mxu0 0
      %357 = vmatpush2.bf16.msra.mxu0 0
      %358 = vmatprep.subr.bf16.mxu0 0
      %359 = vmatpush2.bf16.msra.mxu0 0
      %360 = vmatprep.subr.bf16.mxu0 0
      %361 = vmatpush2.bf16.msra.mxu0 0
      %362 = vmatprep.subr.bf16.mxu0 0
      %363 = vmatpush2.bf16.msra.mxu0 0
      %364 = vmatprep.subr.bf16.mxu0 0
      %365 = vmatpush2.bf16.msra.mxu0 0
      %366 = vmatprep.mubr.bf16.mxu0 0
      %367 = vmatmul.mubr.bf16.gmra.mxu0 %v281
      %v368 = vpop.f32.mrf.mxu0
      %v369 = vadd.f32 0.0, %v368
      %v370 = vpop.f32.mrf.mxu0
      %v371 = vpop.f32.mrf.mxu0
      %v372 = vpop.f32.mrf.mxu0
      %373 = vdwg.mxu0
      %v378 = vsel %vm279, %v224, 0
      %v381 = vsel %vm283, %v249, 0
      %v384 = vsel %vm283, %v250, 0
      %v387 = vsel %vm283, %v251, 0
      %389 = vmatprep.subr.bf16.mxu0 0
      %390 = vmatpush1.bf16.msra.mxu0 0
      %391 = vmatprep.subr.bf16.mxu0 0
      %392 = vmatpush1.bf16.msra.mxu0 0
      %393 = vmatprep.subr.bf16.mxu0 0
      %394 = vmatpush1.bf16.msra.mxu0 0
      %395 = vmatprep.subr.bf16.mxu0 0
      %396 = vmatpush1.bf16.msra.mxu0 0
      %397 = vmatprep.subr.bf16.mxu0 0
      %398 = vmatpush1.bf16.msra.mxu0 0
      %399 = vmatprep.subr.bf16.mxu0 0
      %400 = vmatpush1.bf16.msra.mxu0 0
      %401 = vmatprep.subr.bf16.mxu0 %v384
      %402 = vmatpush1.bf16.msra.mxu0 %v381
      %403 = vmatprep.subr.bf16.mxu0 %v246
      %404 = vmatpush1.bf16.msra.mxu0 %v245
      %405 = vmatprep.subr.bf16.mxu0 0
      %406 = vmatpush2.bf16.msra.mxu0 0
      %407 = vmatprep.subr.bf16.mxu0 0
      %408 = vmatpush2.bf16.msra.mxu0 0
      %409 = vmatprep.subr.bf16.mxu0 0
      %410 = vmatpush2.bf16.msra.mxu0 0
      %411 = vmatprep.subr.bf16.mxu0 0
      %412 = vmatpush2.bf16.msra.mxu0 0
      %413 = vmatprep.subr.bf16.mxu0 0
      %414 = vmatpush2.bf16.msra.mxu0 0
      %415 = vmatprep.subr.bf16.mxu0 0
      %416 = vmatpush2.bf16.msra.mxu0 0
      %417 = vmatprep.subr.bf16.mxu0 0
      %418 = vmatpush2.bf16.msra.mxu0 0
      %419 = vmatprep.subr.bf16.mxu0 0
      %420 = vmatpush2.bf16.msra.mxu0 0
      %421 = vmatprep.mubr.bf16.mxu0 0
      %422 = vmatmul.mubr.bf16.gmra.mxu0 %v378
      %v423 = vpop.f32.mrf.mxu0
      %v424 = vadd.f32 %v328, %v423
      %v425 = vpop.f32.mrf.mxu0
      %v426 = vadd.f32 %v330, %v425
      %v427 = vpop.f32.mrf.mxu0
      %v428 = vpop.f32.mrf.mxu0
      %429 = vdwg.mxu0
      %430 = vmatprep.subr.bf16.mxu0 0
      %431 = vmatpush1.bf16.msra.mxu0 0
      %432 = vmatprep.subr.bf16.mxu0 0
      %433 = vmatpush1.bf16.msra.mxu0 0
      %434 = vmatprep.subr.bf16.mxu0 0
      %435 = vmatpush1.bf16.msra.mxu0 0
      %436 = vmatprep.subr.bf16.mxu0 0
      %437 = vmatpush1.bf16.msra.mxu0 0
      %438 = vmatprep.subr.bf16.mxu0 0
      %439 = vmatpush1.bf16.msra.mxu0 0
      %440 = vmatprep.subr.bf16.mxu0 0
      %441 = vmatpush1.bf16.msra.mxu0 0
      %442 = vmatprep.subr.bf16.mxu0 0
      %443 = vmatpush1.bf16.msra.mxu0 %v387
      %444 = vmatprep.subr.bf16.mxu0 0
      %445 = vmatpush1.bf16.msra.mxu0 %v247
      %446 = vmatprep.subr.bf16.mxu0 0
      %447 = vmatpush2.bf16.msra.mxu0 0
      %448 = vmatprep.subr.bf16.mxu0 0
      %449 = vmatpush2.bf16.msra.mxu0 0
      %450 = vmatprep.subr.bf16.mxu0 0
      %451 = vmatpush2.bf16.msra.mxu0 0
      %452 = vmatprep.subr.bf16.mxu0 0
      %453 = vmatpush2.bf16.msra.mxu0 0
      %454 = vmatprep.subr.bf16.mxu0 0
      %455 = vmatpush2.bf16.msra.mxu0 0
      %456 = vmatprep.subr.bf16.mxu0 0
      %457 = vmatpush2.bf16.msra.mxu0 0
      %458 = vmatprep.subr.bf16.mxu0 0
      %459 = vmatpush2.bf16.msra.mxu0 0
      %460 = vmatprep.subr.bf16.mxu0 0
      %461 = vmatpush2.bf16.msra.mxu0 0
      %462 = vmatprep.mubr.bf16.mxu0 0
      %463 = vmatmul.mubr.bf16.gmra.mxu0 %v378
      %v464 = vpop.f32.mrf.mxu0
      %v465 = vadd.f32 %v369, %v464
      %v466 = vpop.f32.mrf.mxu0
      %v467 = vpop.f32.mrf.mxu0
      %v468 = vpop.f32.mrf.mxu0
      %469 = vdwg.mxu0
      %s470 = scalar_lea.vmem %s1, 8
      %v471 = vld [vmem:[%s470] sm:$0xf]
      %472 = vrot.lane.b32.xlu0 %v245, 126
      %v473 = vpop.permute.xlu0 %472
      %474 = vrot.lane.b32.xlu0 %v246, 126
      %v475 = vpop.permute.xlu0 %474
      %476 = vrot.lane.b32.xlu0 %v247, 126
      %v477 = vpop.permute.xlu0 %476
      %478 = vrot.lane.b32.xlu0 %v248, 126
      %v479 = vpop.permute.xlu0 %478
      %480 = vrot.lane.b32.xlu0 %v249, 126
      %v481 = vpop.permute.xlu0 %480
      %482 = vrot.lane.b32.xlu0 %v250, 126
      %v483 = vpop.permute.xlu0 %482
      %484 = vrot.lane.b32.xlu0 %v251, 126
      %v485 = vpop.permute.xlu0 %484
      %486 = vrot.lane.b32.xlu0 %v252, 126
      %v487 = vpop.permute.xlu0 %486
      %vm488 = vcmask 1031168
      %v489 = vsel %vm488, %v473, %v475
      %v490 = vsel %vm488, %v475, %v477
      %v491 = vsel %vm488, %v477, %v479
      %v492 = vsel %vm488, %v481, %v483
      %v493 = vsel %vm488, %v483, %v485
      %v494 = vsel %vm488, %v485, %v487
      %v499 = vsel %vm279, %v471, 0
      %v502 = vsel %vm283, %v492, 0
      %v505 = vsel %vm283, %v493, 0
      %v508 = vsel %vm283, %v494, 0
      %510 = vmatprep.subr.bf16.mxu0 0
      %511 = vmatpush1.bf16.msra.mxu0 0
      %512 = vmatprep.subr.bf16.mxu0 0
      %513 = vmatpush1.bf16.msra.mxu0 0
      %514 = vmatprep.subr.bf16.mxu0 0
      %515 = vmatpush1.bf16.msra.mxu0 0
      %516 = vmatprep.subr.bf16.mxu0 0
      %517 = vmatpush1.bf16.msra.mxu0 0
      %518 = vmatprep.subr.bf16.mxu0 0
      %519 = vmatpush1.bf16.msra.mxu0 0
      %520 = vmatprep.subr.bf16.mxu0 0
      %521 = vmatpush1.bf16.msra.mxu0 0
      %522 = vmatprep.subr.bf16.mxu0 %v505
      %523 = vmatpush1.bf16.msra.mxu0 %v502
      %524 = vmatprep.subr.bf16.mxu0 %v490
      %525 = vmatpush1.bf16.msra.mxu0 %v489
      %526 = vmatprep.subr.bf16.mxu0 0
      %527 = vmatpush2.bf16.msra.mxu0 0
      %528 = vmatprep.subr.bf16.mxu0 0
      %529 = vmatpush2.bf16.msra.mxu0 0
      %530 = vmatprep.subr.bf16.mxu0 0
      %531 = vmatpush2.bf16.msra.mxu0 0
      %532 = vmatprep.subr.bf16.mxu0 0
      %533 = vmatpush2.bf16.msra.mxu0 0
      %534 = vmatprep.subr.bf16.mxu0 0
      %535 = vmatpush2.bf16.msra.mxu0 0
      %536 = vmatprep.subr.bf16.mxu0 0
      %537 = vmatpush2.bf16.msra.mxu0 0
      %538 = vmatprep.subr.bf16.mxu0 0
      %539 = vmatpush2.bf16.msra.mxu0 0
      %540 = vmatprep.subr.bf16.mxu0 0
      %541 = vmatpush2.bf16.msra.mxu0 0
      %542 = vmatprep.mubr.bf16.mxu0 0
      %543 = vmatmul.mubr.bf16.gmra.mxu0 %v499
      %v544 = vpop.f32.mrf.mxu0
      %v545 = vadd.f32 0.0, %v544
      %v546 = vpop.f32.mrf.mxu0
      %v547 = vadd.f32 0.0, %v546
      %v548 = vpop.f32.mrf.mxu0
      %v549 = vpop.f32.mrf.mxu0
      %550 = vdwg.mxu0
      %551 = vmatprep.subr.bf16.mxu0 0
      %552 = vmatpush1.bf16.msra.mxu0 0
      %553 = vmatprep.subr.bf16.mxu0 0
      %554 = vmatpush1.bf16.msra.mxu0 0
      %555 = vmatprep.subr.bf16.mxu0 0
      %556 = vmatpush1.bf16.msra.mxu0 0
      %557 = vmatprep.subr.bf16.mxu0 0
      %558 = vmatpush1.bf16.msra.mxu0 0
      %559 = vmatprep.subr.bf16.mxu0 0
      %560 = vmatpush1.bf16.msra.mxu0 0
      %561 = vmatprep.subr.bf16.mxu0 0
      %562 = vmatpush1.bf16.msra.mxu0 0
      %563 = vmatprep.subr.bf16.mxu0 0
      %564 = vmatpush1.bf16.msra.mxu0 %v508
      %565 = vmatprep.subr.bf16.mxu0 0
      %566 = vmatpush1.bf16.msra.mxu0 %v491
      %567 = vmatprep.subr.bf16.mxu0 0
      %568 = vmatpush2.bf16.msra.mxu0 0
      %569 = vmatprep.subr.bf16.mxu0 0
      %570 = vmatpush2.bf16.msra.mxu0 0
      %571 = vmatprep.subr.bf16.mxu0 0
      %572 = vmatpush2.bf16.msra.mxu0 0
      %573 = vmatprep.subr.bf16.mxu0 0
      %574 = vmatpush2.bf16.msra.mxu0 0
      %575 = vmatprep.subr.bf16.mxu0 0
      %576 = vmatpush2.bf16.msra.mxu0 0
      %577 = vmatprep.subr.bf16.mxu0 0
      %578 = vmatpush2.bf16.msra.mxu0 0
      %579 = vmatprep.subr.bf16.mxu0 0
      %580 = vmatpush2.bf16.msra.mxu0 0
      %581 = vmatprep.subr.bf16.mxu0 0
      %582 = vmatpush2.bf16.msra.mxu0 0
      %583 = vmatprep.mubr.bf16.mxu0 0
      %584 = vmatmul.mubr.bf16.gmra.mxu0 %v499
      %v585 = vpop.f32.mrf.mxu0
      %v586 = vadd.f32 0.0, %v585
      %v587 = vpop.f32.mrf.mxu0
      %v588 = vpop.f32.mrf.mxu0
      %v589 = vpop.f32.mrf.mxu0
      %590 = vdwg.mxu0
      %v591 = vadd.f32 %v424, %v545
      %v592 = vadd.f32 %v426, %v547
      %v593 = vadd.f32 %v465, %v586
      %s594 = smul.u32 %s16, 3
      %s595 = smul.addr %s594, 8
      %s596 = scalar_lea.vmem [#allocation2], %s595
      %597 = vst [vmem:[%s596] sm:$0xff] %v591
      %598 = vst [vmem:[%s596 + $0x8] sm:$0xff] %v592
      %599 = vst [vmem:[%s596 + $0x10] sm:$0xff] %v593
      %v600 = vld [vmem:[%s2] sm:$0x7]
      %v601 = vld [vmem:[#allocation3] sm:$0xff]
      %v603 = vlaneseq
      %v604 = vshrl.u32 %v603, 7
      %v605 = vsub.s32 0, %v604
      %v606 = vrot.slane %v600, %v605
      %v607 = vlaneseq
      %v608 = vshrl.u32 %v607, 7
      %v609 = vsub.s32 1, %v608
      %v610 = vrot.slane %v600, %v609
      %v611 = vlaneseq
      %v612 = vshrl.u32 %v611, 7
      %v613 = vsub.s32 2, %v612
      %v614 = vrot.slane %v600, %v613
      %v618 = vmul.f32 %v591, %v606
      %v619 = vmul.f32 %v592, %v610
      %v620 = vmul.f32 %v593, %v614
      %v621 = vadd.f32 %v618, %v619
      %v622 = vadd.f32 %v621, %v620
      %623 = vadd.xlane.f32.xlu0 %v622
      %v624 = vpop.xlane.xlu0 %623
      %v625 = vadd.f32 %v601, %v624
      %vm626 = vcmask 7168
      %627 = vst.msk [vmem:[#allocation3] sm:$0xff] %vm626, %v625
      %v628 = vld [vmem:[#allocation4] sm:$0xff]
      %v629 = vmul.f32 %v591, %v591
      %v630 = vmul.f32 %v592, %v592
      %v631 = vmul.f32 %v593, %v593
      %v632 = vmul.f32 %v629, %v606
      %v633 = vmul.f32 %v630, %v610
      %v634 = vmul.f32 %v631, %v614
      %v635 = vadd.f32 %v632, %v633
      %v636 = vadd.f32 %v635, %v634
      %637 = vadd.xlane.f32.xlu0 %v636
      %v638 = vpop.xlane.xlu0 %637
      %v639 = vadd.f32 %v628, %v638
      %640 = vst.msk [vmem:[#allocation4] sm:$0xff] %vm626, %v639
      %p641 = scmp.eq.s32.totalorder %s16, 1
      // Predicated region
      $region45: #{convblock_forward.3} parent=39 // pred_check
        %p642 = pneg %p641
      $region46: #{convblock_forward.3} parent=39 // pred_check_branch
        %644 = sbr.rel (%p642) target = $region48
      $region47: #{convblock_forward.3} parent=39 // pred_region
        %v645 = vld [vmem:[#allocation3] sm:$0xff]
        %v646 = vmul.f32 %v645, 0.0078125
        %v647 = vld [vmem:[#allocation4] sm:$0xff]
        %v648 = vmul.f32 %v647, 0.0078125
        %v649 = vmul.f32 %v646, %v646
        %v650 = vsub.f32 %v648, %v649
        %v651 = vmax.f32 %v650, 0.0
        %v652 = vld [vmem:[%s3] sm:$0xff]
        %v653 = vadd.f32 %v651, 1e-05
        %v654 = vrsqrt.pop %v653
        %v655 = vmul.f32 %v652, %v654
        %v656 = vld [vmem:[%s4] sm:$0xff]
        %v657 = vmul.f32 %v646, %v655
        %v658 = vsub.f32 %v656, %v657
        %v659 = vld [vmem:[#allocation2] sm:$0xff]
        %v660 = vld [vmem:[#allocation2 + $0x8] sm:$0xff]
        %v661 = vld [vmem:[#allocation2 + $0x10] sm:$0xff]
        %v662 = vld [vmem:[#allocation2 + $0x18] sm:$0xff]
        %v663 = vld [vmem:[#allocation2 + $0x20] sm:$0xff]
        %v664 = vld [vmem:[#allocation2 + $0x28] sm:$0xff]
        %666 = vset.pattern.permute.xlu0 0
        %667 = vperm.xlu0 %666, %v655
        %v668 = vpop.permute.xlu0 %667
        %v670 = vmul.f32 %v659, %v668
        %v671 = vmul.f32 %v660, %v668
        %v672 = vmul.f32 %v661, %v668
        %v673 = vmul.f32 %v662, %v668
        %v674 = vmul.f32 %v663, %v668
        %v675 = vmul.f32 %v664, %v668
        %677 = vset.pattern.permute.xlu0 0
        %678 = vperm.xlu0 %677, %v658
        %v679 = vpop.permute.xlu0 %678
        %v681 = vadd.f32 %v670, %v679
        %v682 = vadd.f32 %v671, %v679
        %v683 = vadd.f32 %v672, %v679
        %v684 = vadd.f32 %v673, %v679
        %v685 = vadd.f32 %v674, %v679
        %v686 = vadd.f32 %v675, %v679
        %vm687 = vcmp.gt.f32.partialorder %v681, 0.0
        %vm688 = vcmp.gt.f32.partialorder %v682, 0.0
        %vm689 = vcmp.gt.f32.partialorder %v683, 0.0
        %vm690 = vcmp.gt.f32.partialorder %v684, 0.0
        %vm691 = vcmp.gt.f32.partialorder %v685, 0.0
        %vm692 = vcmp.gt.f32.partialorder %v686, 0.0
        %v693 = vmin.f32 %v681, 0.0
        %v694 = vmin.f32 %v682, 0.0
        %v695 = vmin.f32 %v683, 0.0
        %v696 = vmin.f32 %v684, 0.0
        %v697 = vmin.f32 %v685, 0.0
        %v698 = vmin.f32 %v686, 0.0
        %v699 = vmul.f32 %v693, 1.442695
        %v700 = vpow.pop %v699
        %v701 = vmul.f32 %v694, 1.442695
        %v702 = vpow.pop %v701
        %v703 = vmul.f32 %v695, 1.442695
        %v704 = vpow.pop %v703
        %v705 = vmul.f32 %v696, 1.442695
        %v706 = vpow.pop %v705
        %v707 = vmul.f32 %v697, 1.442695
        %v708 = vpow.pop %v707
        %v709 = vmul.f32 %v698, 1.442695
        %v710 = vpow.pop %v709
        %v711 = vsub.f32 %v700, 1.0
        %v712 = vsub.f32 %v702, 1.0
        %v713 = vsub.f32 %v704, 1.0
        %v714 = vsub.f32 %v706, 1.0
        %v715 = vsub.f32 %v708, 1.0
        %v716 = vsub.f32 %v710, 1.0
        %v717 = vsel %vm687, %v681, %v711
        %v718 = vsel %vm688, %v682, %v712
        %v719 = vsel %vm689, %v683, %v713
        %v720 = vsel %vm690, %v684, %v714
        %v721 = vsel %vm691, %v685, %v715
        %v722 = vsel %vm692, %v686, %v716
        %723 = vst [vmem:[%s5] sm:$0xff] %v717
        %724 = vst [vmem:[%s5 + $0x8] sm:$0xff] %v718
        %725 = vst [vmem:[%s5 + $0x10] sm:$0xff] %v719
        %726 = vst [vmem:[%s5 + $0x18] sm:$0xff] %v720
        %727 = vst [vmem:[%s5 + $0x20] sm:$0xff] %v721
        %728 = vst [vmem:[%s5 + $0x28] sm:$0xff] %v722
      $region48: #{convblock_forward.3} parent=39 // pred_fallthru
        _
      // Predicated region
      $region49: #{convblock_forward.3} parent=39 // pred_check
        %p729 = pneg %p139
      $region50: #{convblock_forward.3} parent=39 // pred_check_branch
        %731 = sbr.rel (%p729) target = $region52
      $region51: #{convblock_forward.3} parent=39 // pred_region
        _
      $region52: #{convblock_forward.3} parent=39 // pred_fallthru
        _
      // Predicated region
      $region53: #{convblock_forward.3} parent=39 // pred_check
        %p732 = pneg %p139
      $region54: #{convblock_forward.3} parent=39 // pred_check_branch
        %734 = sbr.rel (%p732) target = $region56
      $region55: #{convblock_forward.3} parent=39 // pred_region
        _
      $region56: #{convblock_forward.3} parent=39 // pred_fallthru
        _
    $region40: #{convblock_forward.3} parent=5 // pred_fallthru
      _
    %p735 = scmp.le.s32.totalorder 2, %s11
    // Predicated region
    $region57: #{convblock_forward.3} parent=5 // pred_check
      %p736 = pneg %p735
    $region58: #{convblock_forward.3} parent=5 // pred_check_branch
      %738 = sbr.rel (%p736) target = $region60
    $region59: #{convblock_forward.3} parent=5 // pred_region
      %s739 = ssub.s32 %s11, 2
    $region60: #{convblock_forward.3} parent=5 // pred_fallthru
      _
  $region6: #{convblock_forward.3} parent=0 // loop_footer
    %s15 = sadd.s32 1, %s11
  $region7: #{convblock_forward.3} parent=0 // loop_footer_branch
    %10 = sbr.rel target = $region3
  $region8: #{convblock_forward.3} parent=0 // loop_exit
    _

// kernel: convblock_forward.2
$region0: #{convblock_forward.2}
  #allocation0 [shape = 'u32[]', space=smem, size = 0x4, offset = 0x4, fixed_abs, tag = 'smem constant byte address 0x4 - core index']
  #allocation1 [shape = 'u32[144,128]{1,0:T(1,128)}', space=vmem, size = 0x12000, scoped, tag = 'internal scratch']
  #allocation2 [shape = 'f32[2,8,384]{2,1,0:T(8,128)}', space=vmem, size = 0x6000, scoped, tag = 'scratch operand']
  #allocation3 [shape = 'f32[8,1]{1,0:T(8,128)}', space=vmem, size = 0x1000, scoped, tag = 'scratch operand']
  #allocation4 [shape = 'f32[8,1]{1,0:T(8,128)}', space=vmem, size = 0x1000, scoped, tag = 'scratch operand']
  %s0 = inlined_call_operand.vmem [shape: bf16[2,12,512], index: 0, kind: input, shape index: {}]
  %s1 = inlined_call_operand.vmem [shape: bf16[3,8,12], index: 1, kind: input, shape index: {}]
  %s2 = inlined_call_operand.vmem [shape: f32[1,384], index: 2, kind: input, shape index: {}]
  %s3 = inlined_call_operand.vmem [shape: f32[8,1], index: 3, kind: input, shape index: {}]
  %s4 = inlined_call_operand.vmem [shape: f32[8,1], index: 4, kind: input, shape index: {}]
  %s5 = inlined_call_operand.vmem [shape: bf16[2,8,384], index: 5, kind: output, shape index: {}]
  %s6 = sld [smem:[#allocation0]]
  $region61: #{convblock_forward.2} parent=0
    _
  %s8 = ssub.s32 1, %s6
  %s9 = scalar_select 0, %s8, %s6
  loop: start=0, step=1, limit=4
  $region2: #{convblock_forward.2} parent=0 // loop_pre_header
    _
  $region3: #{convblock_forward.2} parent=0 // loop_header
    %s11 = sphi 0, %s15
    %p12 = scmp.ge.s32.totalorder %s11, 4
    %s21 = sphi 0, %s23
    %s24 = sphi 0, %s21
    %s25 = sphi 0, %s24
    %s41 = sphi 0, %s25
    %s45 = sphi 0, %s45
    %s47 = sphi 0, %s45
    %s48 = sphi 0, %s47
    %s62 = sphi 0, %s48
    %s66 = sphi 0, %s66
    %s68 = sphi 0, %s66
    %s69 = sphi 0, %s68
    %s83 = sphi 0, %s69
    %s87 = sphi 0, %s87
    %s89 = sphi 0, %s87
    %s90 = sphi 0, %s89
    %s104 = sphi 0, %s90
    %s108 = sphi 0, %s108
    %s110 = sphi 0, %s108
    %s111 = sphi 0, %s110
    %s125 = sphi 0, %s111
    %s129 = sphi 0, %s129
    %s131 = sphi 0, %s129
    %s132 = sphi 0, %s131
    %s146 = sphi 0, %s132
  $region4: #{convblock_forward.2} parent=0 // loop_header_branch
    %14 = sbr.rel (%p12) target = $region8
  $region5: #{convblock_forward.2} parent=0 // loop_body
    %s16 = ssub.s32 %s11, 1
    %s17 = ssub.s32 %s11, 2
    %s18 = sadd.s32 %s11, 1
    %s19 = ssub.s32 %s11, %s18
    %p20 = scmp.eq.s32.totalorder %s19, 0
    %s22 = sadd.s32 %s21, 1
    %s23 = scalar_select %p20, %s21, %s22
    %p26 = pneg %p20
    %p27 = scmp.eq.s32.totalorder %s11, 1
    %p28 = por %p26, %p27
    %p29 = scmp.ne.s32.totalorder %s21, %s24
    %p30 = scmp.eq.s32.totalorder %s11, 0
    %p31 = por %p29, %p30
    %p32 = scmp.ne.s32.totalorder %s21, %s24
    %p33 = scmp.eq.s32.totalorder %s16, 1
    %p34 = por %p32, %p33
    %p35 = scmp.ne.s32.totalorder %s24, %s25
    %p36 = scmp.eq.s32.totalorder %s16, 0
    %p37 = por %p35, %p36
    %p38 = scmp.ne.s32.totalorder %s24, %s25
    %p39 = scmp.eq.s32.totalorder %s17, 1
    %p40 = por %p38, %p39
    %p42 = scmp.ne.s32.totalorder %s25, %s41
    %p43 = scmp.eq.s32.totalorder %s17, 0
    %p44 = por %p42, %p43
    %s46 = sadd.s32 %s45, 1
    %p49 = scmp.eq.s32.totalorder %s11, 1
    %p50 = scmp.ne.s32.totalorder %s45, %s47
    %p51 = scmp.eq.s32.totalorder %s11, 0
    %p52 = por %p50, %p51
    %p53 = scmp.ne.s32.totalorder %s45, %s47
    %p54 = scmp.eq.s32.totalorder %s16, 1
    %p55 = por %p53, %p54
    %p56 = scmp.ne.s32.totalorder %s47, %s48
    %p57 = scmp.eq.s32.totalorder %s16, 0
    %p58 = por %p56, %p57
    %p59 = scmp.ne.s32.totalorder %s47, %s48
    %p60 = scmp.eq.s32.totalorder %s17, 1
    %p61 = por %p59, %p60
    %p63 = scmp.ne.s32.totalorder %s48, %s62
    %p64 = scmp.eq.s32.totalorder %s17, 0
    %p65 = por %p63, %p64
    %s67 = sadd.s32 %s66, 1
    %p70 = scmp.eq.s32.totalorder %s11, 1
    %p71 = scmp.ne.s32.totalorder %s66, %s68
    %p72 = scmp.eq.s32.totalorder %s11, 0
    %p73 = por %p71, %p72
    %p74 = scmp.ne.s32.totalorder %s66, %s68
    %p75 = scmp.eq.s32.totalorder %s16, 1
    %p76 = por %p74, %p75
    %p77 = scmp.ne.s32.totalorder %s68, %s69
    %p78 = scmp.eq.s32.totalorder %s16, 0
    %p79 = por %p77, %p78
    %p80 = scmp.ne.s32.totalorder %s68, %s69
    %p81 = scmp.eq.s32.totalorder %s17, 1
    %p82 = por %p80, %p81
    %p84 = scmp.ne.s32.totalorder %s69, %s83
    %p85 = scmp.eq.s32.totalorder %s17, 0
    %p86 = por %p84, %p85
    %s88 = sadd.s32 %s87, 1
    %p91 = scmp.eq.s32.totalorder %s11, 1
    %p92 = scmp.ne.s32.totalorder %s87, %s89
    %p93 = scmp.eq.s32.totalorder %s11, 0
    %p94 = por %p92, %p93
    %p95 = scmp.ne.s32.totalorder %s87, %s89
    %p96 = scmp.eq.s32.totalorder %s16, 1
    %p97 = por %p95, %p96
    %p98 = scmp.ne.s32.totalorder %s89, %s90
    %p99 = scmp.eq.s32.totalorder %s16, 0
    %p100 = por %p98, %p99
    %p101 = scmp.ne.s32.totalorder %s89, %s90
    %p102 = scmp.eq.s32.totalorder %s17, 1
    %p103 = por %p101, %p102
    %p105 = scmp.ne.s32.totalorder %s90, %s104
    %p106 = scmp.eq.s32.totalorder %s17, 0
    %p107 = por %p105, %p106
    %s109 = sadd.s32 %s108, 1
    %p112 = scmp.eq.s32.totalorder %s11, 1
    %p113 = scmp.ne.s32.totalorder %s108, %s110
    %p114 = scmp.eq.s32.totalorder %s11, 0
    %p115 = por %p113, %p114
    %p116 = scmp.ne.s32.totalorder %s108, %s110
    %p117 = scmp.eq.s32.totalorder %s16, 1
    %p118 = por %p116, %p117
    %p119 = scmp.ne.s32.totalorder %s110, %s111
    %p120 = scmp.eq.s32.totalorder %s16, 0
    %p121 = por %p119, %p120
    %p122 = scmp.ne.s32.totalorder %s110, %s111
    %p123 = scmp.eq.s32.totalorder %s17, 1
    %p124 = por %p122, %p123
    %p126 = scmp.ne.s32.totalorder %s111, %s125
    %p127 = scmp.eq.s32.totalorder %s17, 0
    %p128 = por %p126, %p127
    %s130 = sadd.s32 %s129, 1
    %p133 = scmp.eq.s32.totalorder %s11, 1
    %p134 = scmp.ne.s32.totalorder %s129, %s131
    %p135 = scmp.eq.s32.totalorder %s11, 0
    %p136 = por %p134, %p135
    %p137 = scmp.ne.s32.totalorder %s129, %s131
    %p138 = scmp.eq.s32.totalorder %s16, 1
    %p139 = por %p137, %p138
    %p140 = scmp.ne.s32.totalorder %s131, %s132
    %p141 = scmp.eq.s32.totalorder %s16, 0
    %p142 = por %p140, %p141
    %p143 = scmp.ne.s32.totalorder %s131, %s132
    %p144 = scmp.eq.s32.totalorder %s17, 1
    %p145 = por %p143, %p144
    %p147 = scmp.ne.s32.totalorder %s132, %s146
    %p148 = scmp.eq.s32.totalorder %s17, 0
    %p149 = por %p147, %p148
    %p150 = scmp.le.s32.totalorder 1, %s11
    %p151 = scmp.lt.s32.totalorder %s11, 3
    %p152 = pnand %p150, %p151
    %p153 = pneg %p152
    // Predicated region
    $region9: #{convblock_forward.2} parent=5 // pred_check
      _
    $region10: #{convblock_forward.2} parent=5 // pred_check_branch
      %155 = sbr.rel (%p152) target = $region12
    $region11: #{convblock_forward.2} parent=5 // pred_region
      %s156 = ssub.s32 %s11, 1
      // Predicated region
      $region13: #{convblock_forward.2} parent=11 // pred_check
        %p157 = pneg %p58
      $region14: #{convblock_forward.2} parent=11 // pred_check_branch
        %159 = sbr.rel (%p157) target = $region16
      $region15: #{convblock_forward.2} parent=11 // pred_region
        _
      $region16: #{convblock_forward.2} parent=11 // pred_fallthru
        _
      // Predicated region
      $region17: #{convblock_forward.2} parent=11 // pred_check
        %p160 = pneg %p79
      $region18: #{convblock_forward.2} parent=11 // pred_check_branch
        %162 = sbr.rel (%p160) target = $region20
      $region19: #{convblock_forward.2} parent=11 // pred_region
        _
      $region20: #{convblock_forward.2} parent=11 // pred_fallthru
        _
      // Predicated region
      $region21: #{convblock_forward.2} parent=11 // pred_check
        %p163 = pneg %p100
      $region22: #{convblock_forward.2} parent=11 // pred_check_branch
        %165 = sbr.rel (%p163) target = $region24
      $region23: #{convblock_forward.2} parent=11 // pred_region
        _
      $region24: #{convblock_forward.2} parent=11 // pred_fallthru
        _
      // Predicated region
      $region25: #{convblock_forward.2} parent=11 // pred_check
        %p166 = pneg %p121
      $region26: #{convblock_forward.2} parent=11 // pred_check_branch
        %168 = sbr.rel (%p166) target = $region28
      $region27: #{convblock_forward.2} parent=11 // pred_region
        _
      $region28: #{convblock_forward.2} parent=11 // pred_fallthru
        _
    $region12: #{convblock_forward.2} parent=5 // pred_fallthru
      _
    %p169 = scmp.lt.s32.totalorder %s11, 2
    // Predicated region
    $region29: #{convblock_forward.2} parent=5 // pred_check
      %p170 = pneg %p169
    $region30: #{convblock_forward.2} parent=5 // pred_check_branch
      %172 = sbr.rel (%p170) target = $region32
    $region31: #{convblock_forward.2} parent=5 // pred_region
      // Predicated region
      $region33: #{convblock_forward.2} parent=31 // pred_check
        %p173 = pneg %p31
      $region34: #{convblock_forward.2} parent=31 // pred_check_branch
        %175 = sbr.rel (%p173) target = $region36
      $region35: #{convblock_forward.2} parent=31 // pred_region
        %p176 = scmp.lt.s32.totalorder %s11, 1
        %s177 = scalar_select %p176, %s11, 1
        %s178 = smul.addr %s177, 8
        %s179 = smul.addr %s178, 4
        %s180 = scalar_lea.vmem %s0, %s179
      $region36: #{convblock_forward.2} parent=31 // pred_fallthru
        _
    $region32: #{convblock_forward.2} parent=5 // pred_fallthru
      _
    %p181 = scmp.le.s32.totalorder 1, %s11
    %p182 = scmp.lt.s32.totalorder %s11, 3
    %p183 = pnand %p181, %p182
    %p184 = pneg %p183
    // Predicated region
    $region37: #{convblock_forward.2} parent=5 // pred_check
      _
    $region38: #{convblock_forward.2} parent=5 // pred_check_branch
      %186 = sbr.rel (%p183) target = $region40
    $region39: #{convblock_forward.2} parent=5 // pred_region
      %s187 = ssub.s32 %s11, 1
      %p188 = scmp.lt.s32.totalorder %s16, 1
      %s189 = scalar_select %p188, %s16, 1
      %s190 = smul.addr %s189, 8
      %s191 = smul.addr %s190, 4
      %s192 = scalar_lea.vmem %s0, %s191
      %p193 = pneg %p37
      %p194 = pneg %p34
      %p195 = pneg %p58
      %p196 = pneg %p55
      %p197 = pneg %p79
      %p198 = pneg %p76
      %p199 = pneg %p100
      %p200 = pneg %p97
      %p201 = pneg %p121
      %p202 = pneg %p118
      %p203 = pneg %p142
      %p204 = pneg %p139
      %p205 = scmp.lt.s32.totalorder %s16, 1
      %s206 = scalar_select %p205, %s16, 1
      %s207 = smul.addr %s206, 8
      %s208 = smul.addr %s207, 4
      %s209 = scalar_lea.vmem %s0, %s208
      %p211 = scmp.eq.s32.totalorder %s16, 0
      // Predicated region
      $region41: #{convblock_forward.2} parent=39 // pred_check
        %p212 = pneg %p211
      $region42: #{convblock_forward.2} parent=39 // pred_check_branch
        %214 = sbr.rel (%p212) target = $region44
      $region43: #{convblock_forward.2} parent=39 // pred_region
        %vm215 = vcmask 7168
        %216 = vst.msk [vmem:[#allocation3] sm:$0xff] %vm215, 0.0
        %217 = vst.msk [vmem:[#allocation4] sm:$0xff] %vm215, 0.0
      $region44: #{convblock_forward.2} parent=39 // pred_fallthru
        _
      %v218 = vld [vmem:[%s209] sm:$0xff]
      %v219 = vld [vmem:[%s209 + $0x8] sm:$0xff]
      %v220 = vld [vmem:[%s209 + $0x10] sm:$0x33]
      %v221 = vld [vmem:[%s209 + $0x18] sm:$0x33]
      %v222 = vld [vmem:[%s1] sm:$0xf]
      %s223 = scalar_lea.vmem %s1, 4
      %v224 = vld [vmem:[%s223] sm:$0xf]
      %v229 = vunpack.c.l.b16 %v218
      %v230 = vunpack.c.h.b16 %v218
      %v231 = vunpack.c.l.b16 %v219
      %v232 = vunpack.c.h.b16 %v219
      %v233 = vunpack.c.l.b16 %v220
      %v234 = vunpack.c.h.b16 %v220
      %v235 = vunpack.c.l.b16 %v221
      %v236 = vunpack.c.h.b16 %v221
      %v237 = vpack.c.b16 %v233, %v229
      %v238 = vpack.c.b16 %v234, %v230
      %v239 = vpack.c.b16 %v235, %v231
      %v240 = vpack.c.b16 %v236, %v232
      %241 = vrot.lane.b32.xlu0 %v237, 127
      %v242 = vpop.permute.xlu0 %241
      %243 = vrot.lane.b32.xlu0 %v238, 127
      %v244 = vpop.permute.xlu0 %243
      %245 = vrot.lane.b32.xlu0 %v239, 127
      %v246 = vpop.permute.xlu0 %245
      %247 = vrot.lane.b32.xlu0 %v240, 127
      %v248 = vpop.permute.xlu0 %247
      %vm249 = vcmask 1039360
      %v250 = vsel %vm249, %v242, %v244
      %v251 = vsel %vm249, %v244, %v246
      %v252 = vsel %vm249, %v246, %v248
      %vm253 = vcmask 97280
      %v255 = vsel %vm253, %v224, 0
      %vm257 = vcmask 1045504
      %v259 = vsel %vm257, %v250, 0
      %v262 = vsel %vm257, %v251, 0
      %v265 = vsel %vm257, %v252, 0
      %267 = vmatprep.subr.bf16.mxu0 0
      %268 = vmatpush1.bf16.msra.mxu0 0
      %269 = vmatprep.subr.bf16.mxu0 0
      %270 = vmatpush1.bf16.msra.mxu0 0
      %271 = vmatprep.subr.bf16.mxu0 0
      %272 = vmatpush1.bf16.msra.mxu0 0
      %273 = vmatprep.subr.bf16.mxu0 0
      %274 = vmatpush1.bf16.msra.mxu0 0
      %275 = vmatprep.subr.bf16.mxu0 0
      %276 = vmatpush1.bf16.msra.mxu0 0
      %277 = vmatprep.subr.bf16.mxu0 0
      %278 = vmatpush1.bf16.msra.mxu0 0
      %279 = vmatprep.subr.bf16.mxu0 0
      %280 = vmatpush1.bf16.msra.mxu0 0
      %281 = vmatprep.subr.bf16.mxu0 %v262
      %282 = vmatpush1.bf16.msra.mxu0 %v259
      %283 = vmatprep.subr.bf16.mxu0 0
      %284 = vmatpush2.bf16.msra.mxu0 0
      %285 = vmatprep.subr.bf16.mxu0 0
      %286 = vmatpush2.bf16.msra.mxu0 0
      %287 = vmatprep.subr.bf16.mxu0 0
      %288 = vmatpush2.bf16.msra.mxu0 0
      %289 = vmatprep.subr.bf16.mxu0 0
      %290 = vmatpush2.bf16.msra.mxu0 0
      %291 = vmatprep.subr.bf16.mxu0 0
      %292 = vmatpush2.bf16.msra.mxu0 0
      %293 = vmatprep.subr.bf16.mxu0 0
      %294 = vmatpush2.bf16.msra.mxu0 0
      %295 = vmatprep.subr.bf16.mxu0 0
      %296 = vmatpush2.bf16.msra.mxu0 0
      %297 = vmatprep.subr.bf16.mxu0 0
      %298 = vmatpush2.bf16.msra.mxu0 0
      %299 = vmatprep.mubr.bf16.mxu0 0
      %300 = vmatmul.mubr.bf16.gmra.mxu0 %v255
      %v301 = vpop.f32.mrf.mxu0
      %v302 = vadd.f32 0.0, %v301
      %v303 = vpop.f32.mrf.mxu0
      %v304 = vadd.f32 0.0, %v303
      %v305 = vpop.f32.mrf.mxu0
      %v306 = vpop.f32.mrf.mxu0
      %307 = vdwg.mxu0
      %308 = vmatprep.subr.bf16.mxu0 0
      %309 = vmatpush1.bf16.msra.mxu0 0
      %310 = vmatprep.subr.bf16.mxu0 0
      %311 = vmatpush1.bf16.msra.mxu0 0
      %312 = vmatprep.subr.bf16.mxu0 0
      %313 = vmatpush1.bf16.msra.mxu0 0
      %314 = vmatprep.subr.bf16.mxu0 0
      %315 = vmatpush1.bf16.msra.mxu0 0
      %316 = vmatprep.subr.bf16.mxu0 0
      %317 = vmatpush1.bf16.msra.mxu0 0
      %318 = vmatprep.subr.bf16.mxu0 0
      %319 = vmatpush1.bf16.msra.mxu0 0
      %320 = vmatprep.subr.bf16.mxu0 0
      %321 = vmatpush1.bf16.msra.mxu0 0
      %322 = vmatprep.subr.bf16.mxu0 0
      %323 = vmatpush1.bf16.msra.mxu0 %v265
      %324 = vmatprep.subr.bf16.mxu0 0
      %325 = vmatpush2.bf16.msra.mxu0 0
      %326 = vmatprep.subr.bf16.mxu0 0
      %327 = vmatpush2.bf16.msra.mxu0 0
      %328 = vmatprep.subr.bf16.mxu0 0
      %329 = vmatpush2.bf16.msra.mxu0 0
      %330 = vmatprep.subr.bf16.mxu0 0
      %331 = vmatpush2.bf16.msra.mxu0 0
      %332 = vmatprep.subr.bf16.mxu0 0
      %333 = vmatpush2.bf16.msra.mxu0 0
      %334 = vmatprep.subr.bf16.mxu0 0
      %335 = vmatpush2.bf16.msra.mxu0 0
      %336 = vmatprep.subr.bf16.mxu0 0
      %337 = vmatpush2.bf16.msra.mxu0 0
      %338 = vmatprep.subr.bf16.mxu0 0
      %339 = vmatpush2.bf16.msra.mxu0 0
      %340 = vmatprep.mubr.bf16.mxu0 0
      %341 = vmatmul.mubr.bf16.gmra.mxu0 %v255
      %v342 = vpop.f32.mrf.mxu0
      %v343 = vadd.f32 0.0, %v342
      %v344 = vpop.f32.mrf.mxu0
      %v345 = vpop.f32.mrf.mxu0
      %v346 = vpop.f32.mrf.mxu0
      %347 = vdwg.mxu0
      %v349 = vsel %vm253, %v222, 0
      %v352 = vsel %vm257, %v237, 0
      %v355 = vsel %vm257, %v238, 0
      %v358 = vsel %vm257, %v239, 0
      %360 = vmatprep.subr.bf16.mxu0 0
      %361 = vmatpush1.bf16.msra.mxu0 0
      %362 = vmatprep.subr.bf16.mxu0 0
      %363 = vmatpush1.bf16.msra.mxu0 0
      %364 = vmatprep.subr.bf16.mxu0 0
      %365 = vmatpush1.bf16.msra.mxu0 0
      %366 = vmatprep.subr.bf16.mxu0 0
      %367 = vmatpush1.bf16.msra.mxu0 0
      %368 = vmatprep.subr.bf16.mxu0 0
      %369 = vmatpush1.bf16.msra.mxu0 0
      %370 = vmatprep.subr.bf16.mxu0 0
      %371 = vmatpush1.bf16.msra.mxu0 0
      %372 = vmatprep.subr.bf16.mxu0 0
      %373 = vmatpush1.bf16.msra.mxu0 0
      %374 = vmatprep.subr.bf16.mxu0 %v355
      %375 = vmatpush1.bf16.msra.mxu0 %v352
      %376 = vmatprep.subr.bf16.mxu0 0
      %377 = vmatpush2.bf16.msra.mxu0 0
      %378 = vmatprep.subr.bf16.mxu0 0
      %379 = vmatpush2.bf16.msra.mxu0 0
      %380 = vmatprep.subr.bf16.mxu0 0
      %381 = vmatpush2.bf16.msra.mxu0 0
      %382 = vmatprep.subr.bf16.mxu0 0
      %383 = vmatpush2.bf16.msra.mxu0 0
      %384 = vmatprep.subr.bf16.mxu0 0
      %385 = vmatpush2.bf16.msra.mxu0 0
      %386 = vmatprep.subr.bf16.mxu0 0
      %387 = vmatpush2.bf16.msra.mxu0 0
      %388 = vmatprep.subr.bf16.mxu0 0
      %389 = vmatpush2.bf16.msra.mxu0 0
      %390 = vmatprep.subr.bf16.mxu0 0
      %391 = vmatpush2.bf16.msra.mxu0 0
      %392 = vmatprep.mubr.bf16.mxu0 0
      %393 = vmatmul.mubr.bf16.gmra.mxu0 %v349
      %v394 = vpop.f32.mrf.mxu0
      %v395 = vadd.f32 %v302, %v394
      %v396 = vpop.f32.mrf.mxu0
      %v397 = vadd.f32 %v304, %v396
      %v398 = vpop.f32.mrf.mxu0
      %v399 = vpop.f32.mrf.mxu0
      %400 = vdwg.mxu0
      %401 = vmatprep.subr.bf16.mxu0 0
      %402 = vmatpush1.bf16.msra.mxu0 0
      %403 = vmatprep.subr.bf16.mxu0 0
      %404 = vmatpush1.bf16.msra.mxu0 0
      %405 = vmatprep.subr.bf16.mxu0 0
      %406 = vmatpush1.bf16.msra.mxu0 0
      %407 = vmatprep.subr.bf16.mxu0 0
      %408 = vmatpush1.bf16.msra.mxu0 0
      %409 = vmatprep.subr.bf16.mxu0 0
      %410 = vmatpush1.bf16.msra.mxu0 0
      %411 = vmatprep.subr.bf16.mxu0 0
      %412 = vmatpush1.bf16.msra.mxu0 0
      %413 = vmatprep.subr.bf16.mxu0 0
      %414 = vmatpush1.bf16.msra.mxu0 0
      %415 = vmatprep.subr.bf16.mxu0 0
      %416 = vmatpush1.bf16.msra.mxu0 %v358
      %417 = vmatprep.subr.bf16.mxu0 0
      %418 = vmatpush2.bf16.msra.mxu0 0
      %419 = vmatprep.subr.bf16.mxu0 0
      %420 = vmatpush2.bf16.msra.mxu0 0
      %421 = vmatprep.subr.bf16.mxu0 0
      %422 = vmatpush2.bf16.msra.mxu0 0
      %423 = vmatprep.subr.bf16.mxu0 0
      %424 = vmatpush2.bf16.msra.mxu0 0
      %425 = vmatprep.subr.bf16.mxu0 0
      %426 = vmatpush2.bf16.msra.mxu0 0
      %427 = vmatprep.subr.bf16.mxu0 0
      %428 = vmatpush2.bf16.msra.mxu0 0
      %429 = vmatprep.subr.bf16.mxu0 0
      %430 = vmatpush2.bf16.msra.mxu0 0
      %431 = vmatprep.subr.bf16.mxu0 0
      %432 = vmatpush2.bf16.msra.mxu0 0
      %433 = vmatprep.mubr.bf16.mxu0 0
      %434 = vmatmul.mubr.bf16.gmra.mxu0 %v349
      %v435 = vpop.f32.mrf.mxu0
      %v436 = vadd.f32 %v343, %v435
      %v437 = vpop.f32.mrf.mxu0
      %v438 = vpop.f32.mrf.mxu0
      %v439 = vpop.f32.mrf.mxu0
      %440 = vdwg.mxu0
      %s441 = scalar_lea.vmem %s1, 8
      %v442 = vld [vmem:[%s441] sm:$0xf]
      %443 = vrot.lane.b32.xlu0 %v237, 126
      %v444 = vpop.permute.xlu0 %443
      %445 = vrot.lane.b32.xlu0 %v238, 126
      %v446 = vpop.permute.xlu0 %445
      %447 = vrot.lane.b32.xlu0 %v239, 126
      %v448 = vpop.permute.xlu0 %447
      %449 = vrot.lane.b32.xlu0 %v240, 126
      %v450 = vpop.permute.xlu0 %449
      %vm451 = vcmask 1031168
      %v452 = vsel %vm451, %v444, %v446
      %v453 = vsel %vm451, %v446, %v448
      %v454 = vsel %vm451, %v448, %v450
      %v456 = vsel %vm253, %v442, 0
      %v459 = vsel %vm257, %v452, 0
      %v462 = vsel %vm257, %v453, 0
      %v465 = vsel %vm257, %v454, 0
      %467 = vmatprep.subr.bf16.mxu0 0
      %468 = vmatpush1.bf16.msra.mxu0 0
      %469 = vmatprep.subr.bf16.mxu0 0
      %470 = vmatpush1.bf16.msra.mxu0 0
      %471 = vmatprep.subr.bf16.mxu0 0
      %472 = vmatpush1.bf16.msra.mxu0 0
      %473 = vmatprep.subr.bf16.mxu0 0
      %474 = vmatpush1.bf16.msra.mxu0 0
      %475 = vmatprep.subr.bf16.mxu0 0
      %476 = vmatpush1.bf16.msra.mxu0 0
      %477 = vmatprep.subr.bf16.mxu0 0
      %478 = vmatpush1.bf16.msra.mxu0 0
      %479 = vmatprep.subr.bf16.mxu0 0
      %480 = vmatpush1.bf16.msra.mxu0 0
      %481 = vmatprep.subr.bf16.mxu0 %v462
      %482 = vmatpush1.bf16.msra.mxu0 %v459
      %483 = vmatprep.subr.bf16.mxu0 0
      %484 = vmatpush2.bf16.msra.mxu0 0
      %485 = vmatprep.subr.bf16.mxu0 0
      %486 = vmatpush2.bf16.msra.mxu0 0
      %487 = vmatprep.subr.bf16.mxu0 0
      %488 = vmatpush2.bf16.msra.mxu0 0
      %489 = vmatprep.subr.bf16.mxu0 0
      %490 = vmatpush2.bf16.msra.mxu0 0
      %491 = vmatprep.subr.bf16.mxu0 0
      %492 = vmatpush2.bf16.msra.mxu0 0
      %493 = vmatprep.subr.bf16.mxu0 0
      %494 = vmatpush2.bf16.msra.mxu0 0
      %495 = vmatprep.subr.bf16.mxu0 0
      %496 = vmatpush2.bf16.msra.mxu0 0
      %497 = vmatprep.subr.bf16.mxu0 0
      %498 = vmatpush2.bf16.msra.mxu0 0
      %499 = vmatprep.mubr.bf16.mxu0 0
      %500 = vmatmul.mubr.bf16.gmra.mxu0 %v456
      %v501 = vpop.f32.mrf.mxu0
      %v502 = vadd.f32 0.0, %v501
      %v503 = vpop.f32.mrf.mxu0
      %v504 = vadd.f32 0.0, %v503
      %v505 = vpop.f32.mrf.mxu0
      %v506 = vpop.f32.mrf.mxu0
      %507 = vdwg.mxu0
      %508 = vmatprep.subr.bf16.mxu0 0
      %509 = vmatpush1.bf16.msra.mxu0 0
      %510 = vmatprep.subr.bf16.mxu0 0
      %511 = vmatpush1.bf16.msra.mxu0 0
      %512 = vmatprep.subr.bf16.mxu0 0
      %513 = vmatpush1.bf16.msra.mxu0 0
      %514 = vmatprep.subr.bf16.mxu0 0
      %515 = vmatpush1.bf16.msra.mxu0 0
      %516 = vmatprep.subr.bf16.mxu0 0
      %517 = vmatpush1.bf16.msra.mxu0 0
      %518 = vmatprep.subr.bf16.mxu0 0
      %519 = vmatpush1.bf16.msra.mxu0 0
      %520 = vmatprep.subr.bf16.mxu0 0
      %521 = vmatpush1.bf16.msra.mxu0 0
      %522 = vmatprep.subr.bf16.mxu0 0
      %523 = vmatpush1.bf16.msra.mxu0 %v465
      %524 = vmatprep.subr.bf16.mxu0 0
      %525 = vmatpush2.bf16.msra.mxu0 0
      %526 = vmatprep.subr.bf16.mxu0 0
      %527 = vmatpush2.bf16.msra.mxu0 0
      %528 = vmatprep.subr.bf16.mxu0 0
      %529 = vmatpush2.bf16.msra.mxu0 0
      %530 = vmatprep.subr.bf16.mxu0 0
      %531 = vmatpush2.bf16.msra.mxu0 0
      %532 = vmatprep.subr.bf16.mxu0 0
      %533 = vmatpush2.bf16.msra.mxu0 0
      %534 = vmatprep.subr.bf16.mxu0 0
      %535 = vmatpush2.bf16.msra.mxu0 0
      %536 = vmatprep.subr.bf16.mxu0 0
      %537 = vmatpush2.bf16.msra.mxu0 0
      %538 = vmatprep.subr.bf16.mxu0 0
      %539 = vmatpush2.bf16.msra.mxu0 0
      %540 = vmatprep.mubr.bf16.mxu0 0
      %541 = vmatmul.mubr.bf16.gmra.mxu0 %v456
      %v542 = vpop.f32.mrf.mxu0
      %v543 = vadd.f32 0.0, %v542
      %v544 = vpop.f32.mrf.mxu0
      %v545 = vpop.f32.mrf.mxu0
      %v546 = vpop.f32.mrf.mxu0
      %547 = vdwg.mxu0
      %v548 = vadd.f32 %v395, %v502
      %v549 = vadd.f32 %v397, %v504
      %v550 = vadd.f32 %v436, %v543
      %s551 = smul.u32 %s16, 3
      %s552 = smul.addr %s551, 8
      %s553 = scalar_lea.vmem [#allocation2], %s552
      %554 = vst [vmem:[%s553] sm:$0xff] %v548
      %555 = vst [vmem:[%s553 + $0x8] sm:$0xff] %v549
      %556 = vst [vmem:[%s553 + $0x10] sm:$0xff] %v550
      %v557 = vld [vmem:[%s2] sm:$0x7]
      %v558 = vld [vmem:[#allocation3] sm:$0xff]
      %v560 = vlaneseq
      %v561 = vshrl.u32 %v560, 7
      %v562 = vsub.s32 0, %v561
      %v563 = vrot.slane %v557, %v562
      %v564 = vlaneseq
      %v565 = vshrl.u32 %v564, 7
      %v566 = vsub.s32 1, %v565
      %v567 = vrot.slane %v557, %v566
      %v568 = vlaneseq
      %v569 = vshrl.u32 %v568, 7
      %v570 = vsub.s32 2, %v569
      %v571 = vrot.slane %v557, %v570
      %v575 = vmul.f32 %v548, %v563
      %v576 = vmul.f32 %v549, %v567
      %v577 = vmul.f32 %v550, %v571
      %v578 = vadd.f32 %v575, %v576
      %v579 = vadd.f32 %v578, %v577
      %580 = vadd.xlane.f32.xlu0 %v579
      %v581 = vpop.xlane.xlu0 %580
      %v582 = vadd.f32 %v558, %v581
      %vm583 = vcmask 7168
      %584 = vst.msk [vmem:[#allocation3] sm:$0xff] %vm583, %v582
      %v585 = vld [vmem:[#allocation4] sm:$0xff]
      %v586 = vmul.f32 %v548, %v548
      %v587 = vmul.f32 %v549, %v549
      %v588 = vmul.f32 %v550, %v550
      %v589 = vmul.f32 %v586, %v563
      %v590 = vmul.f32 %v587, %v567
      %v591 = vmul.f32 %v588, %v571
      %v592 = vadd.f32 %v589, %v590
      %v593 = vadd.f32 %v592, %v591
      %594 = vadd.xlane.f32.xlu0 %v593
      %v595 = vpop.xlane.xlu0 %594
      %v596 = vadd.f32 %v585, %v595
      %597 = vst.msk [vmem:[#allocation4] sm:$0xff] %vm583, %v596
      %p598 = scmp.eq.s32.totalorder %s16, 1
      // Predicated region
      $region45: #{convblock_forward.2} parent=39 // pred_check
        %p599 = pneg %p598
      $region46: #{convblock_forward.2} parent=39 // pred_check_branch
        %601 = sbr.rel (%p599) target = $region48
      $region47: #{convblock_forward.2} parent=39 // pred_region
        %v602 = vld [vmem:[#allocation3] sm:$0xff]
        %v603 = vmul.f32 %v602, 0.001953125
        %v604 = vld [vmem:[#allocation4] sm:$0xff]
        %v605 = vmul.f32 %v604, 0.001953125
        %v606 = vmul.f32 %v603, %v603
        %v607 = vsub.f32 %v605, %v606
        %v608 = vmax.f32 %v607, 0.0
        %v609 = vld [vmem:[%s3] sm:$0xff]
        %v610 = vadd.f32 %v608, 1e-05
        %v611 = vrsqrt.pop %v610
        %v612 = vmul.f32 %v609, %v611
        %v613 = vld [vmem:[%s4] sm:$0xff]
        %v614 = vmul.f32 %v603, %v612
        %v615 = vsub.f32 %v613, %v614
        %v616 = vld [vmem:[#allocation2] sm:$0xff]
        %v617 = vld [vmem:[#allocation2 + $0x8] sm:$0xff]
        %v618 = vld [vmem:[#allocation2 + $0x10] sm:$0xff]
        %v619 = vld [vmem:[#allocation2 + $0x18] sm:$0xff]
        %v620 = vld [vmem:[#allocation2 + $0x20] sm:$0xff]
        %v621 = vld [vmem:[#allocation2 + $0x28] sm:$0xff]
        %623 = vset.pattern.permute.xlu0 0
        %624 = vperm.xlu0 %623, %v612
        %v625 = vpop.permute.xlu0 %624
        %v627 = vmul.f32 %v616, %v625
        %v628 = vmul.f32 %v617, %v625
        %v629 = vmul.f32 %v618, %v625
        %v630 = vmul.f32 %v619, %v625
        %v631 = vmul.f32 %v620, %v625
        %v632 = vmul.f32 %v621, %v625
        %634 = vset.pattern.permute.xlu0 0
        %635 = vperm.xlu0 %634, %v615
        %v636 = vpop.permute.xlu0 %635
        %v638 = vadd.f32 %v627, %v636
        %v639 = vadd.f32 %v628, %v636
        %v640 = vadd.f32 %v629, %v636
        %v641 = vadd.f32 %v630, %v636
        %v642 = vadd.f32 %v631, %v636
        %v643 = vadd.f32 %v632, %v636
        %vm644 = vcmp.gt.f32.partialorder %v638, 0.0
        %vm645 = vcmp.gt.f32.partialorder %v639, 0.0
        %vm646 = vcmp.gt.f32.partialorder %v640, 0.0
        %vm647 = vcmp.gt.f32.partialorder %v641, 0.0
        %vm648 = vcmp.gt.f32.partialorder %v642, 0.0
        %vm649 = vcmp.gt.f32.partialorder %v643, 0.0
        %v650 = vmin.f32 %v638, 0.0
        %v651 = vmin.f32 %v639, 0.0
        %v652 = vmin.f32 %v640, 0.0
        %v653 = vmin.f32 %v641, 0.0
        %v654 = vmin.f32 %v642, 0.0
        %v655 = vmin.f32 %v643, 0.0
        %v656 = vmul.f32 %v650, 1.442695
        %v657 = vpow.pop %v656
        %v658 = vmul.f32 %v651, 1.442695
        %v659 = vpow.pop %v658
        %v660 = vmul.f32 %v652, 1.442695
        %v661 = vpow.pop %v660
        %v662 = vmul.f32 %v653, 1.442695
        %v663 = vpow.pop %v662
        %v664 = vmul.f32 %v654, 1.442695
        %v665 = vpow.pop %v664
        %v666 = vmul.f32 %v655, 1.442695
        %v667 = vpow.pop %v666
        %v668 = vsub.f32 %v657, 1.0
        %v669 = vsub.f32 %v659, 1.0
        %v670 = vsub.f32 %v661, 1.0
        %v671 = vsub.f32 %v663, 1.0
        %v672 = vsub.f32 %v665, 1.0
        %v673 = vsub.f32 %v667, 1.0
        %v674 = vsel %vm644, %v638, %v668
        %v675 = vsel %vm645, %v639, %v669
        %v676 = vsel %vm646, %v640, %v670
        %v677 = vsel %vm647, %v641, %v671
        %v678 = vsel %vm648, %v642, %v672
        %v679 = vsel %vm649, %v643, %v673
        %v680 = vpack.c.bf16 %v674, %v674
        %v681 = vpack.c.bf16 %v675, %v675
        %v682 = vpack.c.bf16 %v676, %v676
        %v683 = vpack.c.bf16 %v677, %v677
        %v684 = vpack.c.bf16 %v678, %v678
        %v685 = vpack.c.bf16 %v679, %v679
        %v692 = vunpack.c.l.b16 %v680
        %v693 = vunpack.c.l.b16 %v681
        %v694 = vunpack.c.l.b16 %v682
        %v695 = vunpack.c.l.b16 %v683
        %v696 = vunpack.c.l.b16 %v684
        %v697 = vunpack.c.l.b16 %v685
        %v698 = vpack.c.b16 %v693, %v692
        %v699 = vpack.c.b16 %v694, %v694
        %v700 = vpack.c.b16 %v696, %v695
        %v701 = vpack.c.b16 %v697, %v697
        %706 = vst [vmem:[%s5] sm:$0xff] %v698
        %707 = vst [vmem:[%s5 + $0x8] sm:$0xf] %v699
        %708 = vst [vmem:[%s5 + $0xc] sm:$0xff] %v700
        %709 = vst [vmem:[%s5 + $0x14] sm:$0xf] %v701
      $region48: #{convblock_forward.2} parent=39 // pred_fallthru
        _
      // Predicated region
      $region49: #{convblock_forward.2} parent=39 // pred_check
        %p710 = pneg %p139
      $region50: #{convblock_forward.2} parent=39 // pred_check_branch
        %712 = sbr.rel (%p710) target = $region52
      $region51: #{convblock_forward.2} parent=39 // pred_region
        _
      $region52: #{convblock_forward.2} parent=39 // pred_fallthru
        _
      // Predicated region
      $region53: #{convblock_forward.2} parent=39 // pred_check
        %p713 = pneg %p139
      $region54: #{convblock_forward.2} parent=39 // pred_check_branch
        %715 = sbr.rel (%p713) target = $region56
      $region55: #{convblock_forward.2} parent=39 // pred_region
        _
      $region56: #{convblock_forward.2} parent=39 // pred_fallthru
        _
    $region40: #{convblock_forward.2} parent=5 // pred_fallthru
      _
    %p716 = scmp.le.s32.totalorder 2, %s11
    // Predicated region
    $region57: #{convblock_forward.2} parent=5 // pred_check
      %p717 = pneg %p716
    $region58: #{convblock_forward.2} parent=5 // pred_check_branch
      %719 = sbr.rel (%p717) target = $region60
    $region59: #{convblock_forward.2} parent=5 // pred_region
      %s720 = ssub.s32 %s11, 2
    $region60: #{convblock_forward.2} parent=5 // pred_fallthru
      _
  $region6: #{convblock_forward.2} parent=0 // loop_footer
    %s15 = sadd.s32 1, %s11
  $region7: #{convblock_forward.2} parent=0 // loop_footer_branch
    %10 = sbr.rel target = $region3
  $region8: #{convblock_forward.2} parent=0 // loop_exit
    _

</llo_original>
